<compile_context>
chip_gen: v6e
topology: v6e:2x2x1
jax: 0.10.0
libtpu: 0.0.40
codegen_flags: <defaults>
</compile_context>

<pallas_src>
import functools

import jax
import jax.numpy as jnp
from jax.experimental import pallas as pl
from jax.experimental.pallas import tpu as pltpu

IN_DIM = 784
H1_DIM = 128
H2_DIM = 64          # logical fc2 width
H2_PAD = 128         # lane-padded fc2 width
OUT_DIM = 10         # logical fc3 width
OUT_PAD = 128        # lane-padded fc3 width (lane-dense output store)
NEG_BIG = -1e30      # padded logit bias -> exp() == 0 exactly in f32


def _mlp_kernel(x_ref, w1_ref, b1_ref, w2_ref, b2_ref, w3_ref, b3_ref, o_ref):
    # fc1 + ReLU   (bf16 MXU matmul, f32 accumulation + elementwise)
    h1 = jnp.dot(x_ref[...], w1_ref[...], preferred_element_type=jnp.float32)
    h1 = jnp.maximum(h1 + b1_ref[...], 0.0)

    # fc2 + ReLU   (padded to 128 outputs; extra cols have w=0, b=0 -> relu 0)
    h2 = jnp.dot(h1.astype(jnp.bfloat16), w2_ref[...],
                 preferred_element_type=jnp.float32)
    h2 = jnp.maximum(h2 + b2_ref[...], 0.0)

    # fc3          (padded to 128 outputs; padded cols get bias -1e30)
    logits = jnp.dot(h2.astype(jnp.bfloat16), w3_ref[...],
                     preferred_element_type=jnp.float32)
    logits = logits + b3_ref[...]

    # softmax over dim=1, numerically stable; padded columns contribute 0 mass
    m = jnp.max(logits, axis=-1, keepdims=True)
    e = jnp.exp(logits - m)
    denom = jnp.sum(e, axis=-1, keepdims=True)
    o_ref[...] = (e * pl.reciprocal(denom, approx=True)).astype(o_ref.dtype)


def prepare_params(params):
    """Cast weights to bf16 and lane-pad fc2/fc3 for the kernel.

    Input (logical, torch-equivalent, stored (in, out)):
      w1 (784,128) b1 (1,128) w2 (128,64) b2 (1,64) w3 (64,10) b3 (1,10)
    Output (kernel layout):
      w1 (784,128) bf16, b1 (1,128) f32,
      w2 (128,128) bf16, b2 (1,128) f32   (cols 64.. are zero),
      w3 (128,128) bf16, b3 (1,128) f32   (rows 64.. zero, cols 10.. zero,
                                           bias cols 10.. = -1e30).
    """
    w1, b1, w2, b2, w3, b3 = params

    w2p = jnp.zeros((H1_DIM, H2_PAD), jnp.float32).at[:, :H2_DIM].set(w2)
    b2p = jnp.zeros((1, H2_PAD), jnp.float32).at[:, :H2_DIM].set(b2)

    w3p = jnp.zeros((H2_PAD, OUT_PAD), jnp.float32).at[:H2_DIM, :OUT_DIM].set(w3)
    b3p = jnp.full((1, OUT_PAD), NEG_BIG, jnp.float32).at[:, :OUT_DIM].set(b3)

    return (
        w1.astype(jnp.bfloat16), b1.astype(jnp.float32),
        w2p.astype(jnp.bfloat16), b2p,
        w3p.astype(jnp.bfloat16), b3p,
    )


@functools.partial(jax.jit, static_argnames=("tm",))
def mlp_forward(x, kernel_params, *, tm=256):
    """x: (B, 784) float32 -> (B, 10) float32 softmax probabilities.

    tm: batch tile (rows per grid step). 256 fills the v6e/v7x MXU; 128 is
    enough on v5e. Small B is zero-padded up to one tile (MXU is then mostly
    idle -- batching requests is the only way to recover throughput there).
    """
    w1, b1, w2, b2, w3, b3 = kernel_params
    B = x.shape[0]
    num_tiles = pl.cdiv(B, tm)
    b_pad = num_tiles * tm
    if b_pad != B:
        x = jnp.pad(x, ((0, b_pad - B), (0, 0)))
    x = x.astype(jnp.bfloat16)

    const = lambda i: (0, 0)  # weights / biases: VMEM-resident, one block
    cost = pl.CostEstimate(
        flops=2 * b_pad * (IN_DIM * H1_DIM + H1_DIM * H2_PAD + H2_PAD * OUT_PAD),
        transcendentals=b_pad * (OUT_PAD + 1),           # exp row + reciprocal
        bytes_accessed=(x.size * 2                        # bf16 x stream
                        + (w1.size + w2.size + w3.size) * 2
                        + (b1.size + b2.size + b3.size) * 4
                        + b_pad * OUT_PAD * 4),           # f32 output
    )

    out = pl.pallas_call(
        _mlp_kernel,
        out_shape=jax.ShapeDtypeStruct((b_pad, OUT_PAD), jnp.float32),
        grid=(num_tiles,),
        in_specs=[
            pl.BlockSpec((tm, IN_DIM), lambda i: (i, 0)),     # x: streamed
            pl.BlockSpec((IN_DIM, H1_DIM), const),            # w1
            pl.BlockSpec((1, H1_DIM), const),                 # b1
            pl.BlockSpec((H1_DIM, H2_PAD), const),            # w2 (padded)
            pl.BlockSpec((1, H2_PAD), const),                 # b2 (padded)
            pl.BlockSpec((H2_PAD, OUT_PAD), const),           # w3 (padded)
            pl.BlockSpec((1, OUT_PAD), const),                # b3 (padded)
        ],
        out_specs=pl.BlockSpec((tm, OUT_PAD), lambda i: (i, 0)),
        compiler_params=pltpu.CompilerParams(
            dimension_semantics=("parallel",)),               # 2 TCs on v7x
        cost_estimate=cost,
    )(x, w1, b1, w2, b2, w3, b3)

    return out[:B, :OUT_DIM]


def init_params(key):
    """Deterministic init mimicking torch.nn.Linear (uniform +/- 1/sqrt(fan_in)).

    Weights stored (in_features, out_features); biases (1, out_features).
    """
    sizes = [(IN_DIM, H1_DIM), (H1_DIM, H2_DIM), (H2_DIM, OUT_DIM)]
    params = []
    for i, (fan_in, fan_out) in enumerate(sizes):
        kw, kb = jax.random.split(jax.random.fold_in(key, i))
        bound = 1.0 / jnp.sqrt(float(fan_in))
        w = jax.random.uniform(kw, (fan_in, fan_out), jnp.float32, -bound, bound)
        b = jax.random.uniform(kb, (1, fan_out), jnp.float32, -bound, bound)
        params.extend([w, b])
    return tuple(params)


def reference_forward(x, params):
    """Pure-JAX f32 reference of the torch forward pass."""
    w1, b1, w2, b2, w3, b3 = params
    h1 = jnp.maximum(x @ w1 + b1, 0.0)
    h2 = jnp.maximum(h1 @ w2 + b2, 0.0)
    logits = h2 @ w3 + b3
    return jax.nn.softmax(logits, axis=1)


if __name__ == "__main__":
    key = jax.random.PRNGKey(0)
    k_x, k_p = jax.random.split(key)

    B = 8  # small demo batch (gets padded to one tile inside the wrapper)
    x = jax.random.normal(k_x, (B, IN_DIM), dtype=jnp.float32)
    params = init_params(k_p)
    kparams = prepare_params(params)

    out = mlp_forward(x, kparams)
    out = jax.block_until_ready(out)

    ref = reference_forward(x, params)
    assert out.shape == (B, OUT_DIM)
    # bf16 matmul operands + approx reciprocal -> compare with relaxed tolerance
    assert jnp.allclose(out, ref, atol=5e-3, rtol=0.0), float(
        jnp.max(jnp.abs(out - ref)))
    assert jnp.allclose(jnp.sum(out, axis=1), 1.0, atol=2e-3)
    assert bool(jnp.all(out >= 0.0))

    print("KERNEL_OK")
</pallas_src>

<mosaic_0001>
module attributes {stable_mosaic.version = 11 : i64} {
  func.func @_mlp_kernel(%arg0: i32, %arg1: memref<256x784xbf16, #tpu.memory_space<vmem>>, %arg2: memref<784x128xbf16, #tpu.memory_space<vmem>>, %arg3: memref<1x128xf32, #tpu.memory_space<vmem>>, %arg4: memref<128x128xbf16, #tpu.memory_space<vmem>>, %arg5: memref<1x128xf32, #tpu.memory_space<vmem>>, %arg6: memref<128x128xbf16, #tpu.memory_space<vmem>>, %arg7: memref<1x128xf32, #tpu.memory_space<vmem>>, %arg8: memref<256x128xf32, #tpu.memory_space<vmem>>) attributes {dimension_semantics = [#tpu.dimension_semantics<parallel>], iteration_bounds = array<i64: 1>, scalar_prefetch = 0 : i64, scratch_operands = 0 : i64, tpu.core_type = #tpu.core_type<tc>, window_params = [{transform_indices = @transform_0, window_bounds = array<i64: 256, 784>}, {pipeline_mode = #tpu.pipeline_mode<synchronous>, transform_indices = @transform_1, window_bounds = array<i64: 784, 128>}, {pipeline_mode = #tpu.pipeline_mode<synchronous>, transform_indices = @transform_2, window_bounds = array<i64: 1, 128>}, {pipeline_mode = #tpu.pipeline_mode<synchronous>, transform_indices = @transform_3, window_bounds = array<i64: 128, 128>}, {pipeline_mode = #tpu.pipeline_mode<synchronous>, transform_indices = @transform_4, window_bounds = array<i64: 1, 128>}, {pipeline_mode = #tpu.pipeline_mode<synchronous>, transform_indices = @transform_5, window_bounds = array<i64: 128, 128>}, {pipeline_mode = #tpu.pipeline_mode<synchronous>, transform_indices = @transform_6, window_bounds = array<i64: 1, 128>}, {transform_indices = @transform_7, window_bounds = array<i64: 256, 128>}]} {
    %c0 = arith.constant 0 : index
    %c0_0 = arith.constant 0 : index
    %0 = vector.load %arg1[%c0, %c0_0] : memref<256x784xbf16, #tpu.memory_space<vmem>>, vector<256x784xbf16>
    %c0_1 = arith.constant 0 : index
    %c0_2 = arith.constant 0 : index
    %1 = vector.load %arg2[%c0_1, %c0_2] : memref<784x128xbf16, #tpu.memory_space<vmem>>, vector<784x128xbf16>
    %cst = arith.constant dense<0.000000e+00> : vector<256x128xf32>
    %2 = tpu.matmul %0, %1, %cst {dimension_numbers = #tpu.dot_dimension_numbers<[1], [0], [0], [1], [0, 0, 1, 1], [], []>} : vector<256x784xbf16>, vector<784x128xbf16>, vector<256x128xf32> -> vector<256x128xf32>
    %c0_3 = arith.constant 0 : index
    %c0_4 = arith.constant 0 : index
    %3 = vector.load %arg3[%c0_3, %c0_4] : memref<1x128xf32, #tpu.memory_space<vmem>>, vector<1x128xf32>
    %4 = vector.broadcast %3 : vector<1x128xf32> to vector<256x128xf32>
    %5 = arith.addf %2, %4 : vector<256x128xf32>
    %cst_5 = arith.constant 0.000000e+00 : f32
    %6 = vector.broadcast %cst_5 : f32 to vector<256x128xf32>
    %7 = arith.maximumf %5, %6 : vector<256x128xf32>
    %8 = arith.truncf %7 : vector<256x128xf32> to vector<256x128xbf16>
    %c0_6 = arith.constant 0 : index
    %c0_7 = arith.constant 0 : index
    %9 = vector.load %arg4[%c0_6, %c0_7] : memref<128x128xbf16, #tpu.memory_space<vmem>>, vector<128x128xbf16>
    %cst_8 = arith.constant dense<0.000000e+00> : vector<256x128xf32>
    %10 = tpu.matmul %8, %9, %cst_8 {dimension_numbers = #tpu.dot_dimension_numbers<[1], [0], [0], [1], [0, 0, 1, 1], [], []>} : vector<256x128xbf16>, vector<128x128xbf16>, vector<256x128xf32> -> vector<256x128xf32>
    %c0_9 = arith.constant 0 : index
    %c0_10 = arith.constant 0 : index
    %11 = vector.load %arg5[%c0_9, %c0_10] : memref<1x128xf32, #tpu.memory_space<vmem>>, vector<1x128xf32>
    %12 = vector.broadcast %11 : vector<1x128xf32> to vector<256x128xf32>
    %13 = arith.addf %10, %12 : vector<256x128xf32>
    %cst_11 = arith.constant 0.000000e+00 : f32
    %14 = vector.broadcast %cst_11 : f32 to vector<256x128xf32>
    %15 = arith.maximumf %13, %14 : vector<256x128xf32>
    %16 = arith.truncf %15 : vector<256x128xf32> to vector<256x128xbf16>
    %c0_12 = arith.constant 0 : index
    %c0_13 = arith.constant 0 : index
    %17 = vector.load %arg6[%c0_12, %c0_13] : memref<128x128xbf16, #tpu.memory_space<vmem>>, vector<128x128xbf16>
    %cst_14 = arith.constant dense<0.000000e+00> : vector<256x128xf32>
    %18 = tpu.matmul %16, %17, %cst_14 {dimension_numbers = #tpu.dot_dimension_numbers<[1], [0], [0], [1], [0, 0, 1, 1], [], []>} : vector<256x128xbf16>, vector<128x128xbf16>, vector<256x128xf32> -> vector<256x128xf32>
    %c0_15 = arith.constant 0 : index
    %c0_16 = arith.constant 0 : index
    %19 = vector.load %arg7[%c0_15, %c0_16] : memref<1x128xf32, #tpu.memory_space<vmem>>, vector<1x128xf32>
    %20 = vector.broadcast %19 : vector<1x128xf32> to vector<256x128xf32>
    %21 = arith.addf %18, %20 : vector<256x128xf32>
    %cst_17 = arith.constant dense<0xFF800000> : vector<256xf32>
    %22 = vector.multi_reduction <maximumf>, %21, %cst_17 [1] : vector<256x128xf32> to vector<256xf32>
    %23 = vector.shape_cast %22 : vector<256xf32> to vector<256x1xf32>
    %24 = vector.broadcast %23 : vector<256x1xf32> to vector<256x128xf32>
    %25 = arith.subf %21, %24 : vector<256x128xf32>
    %26 = math.exp %25 : vector<256x128xf32>
    %cst_18 = arith.constant dense<0.000000e+00> : vector<256xf32>
    %27 = vector.multi_reduction <add>, %26, %cst_18 [1] : vector<256x128xf32> to vector<256xf32>
    %28 = vector.shape_cast %27 : vector<256xf32> to vector<256x1xf32>
    %29 = tpu.reciprocal %28 {approx = true} : vector<256x1xf32> -> vector<256x1xf32>
    %30 = vector.broadcast %29 : vector<256x1xf32> to vector<256x128xf32>
    %31 = arith.mulf %26, %30 : vector<256x128xf32>
    %c0_19 = arith.constant 0 : index
    %c0_20 = arith.constant 0 : index
    %32 = vector.load %arg8[%c0_19, %c0_20] : memref<256x128xf32, #tpu.memory_space<vmem>>, vector<256x128xf32>
    tpu.vector_store %arg8[%c0_19, %c0_20], %31 {strides = array<i32>} : memref<256x128xf32, #tpu.memory_space<vmem>>, vector<256x128xf32>,
    return
  }
  func.func @transform_0(%arg0: i32) -> (i32, i32) {
    %c0_i32 = arith.constant 0 : i32
    %c0_i32_0 = arith.constant 0 : i32
    return %arg0, %c0_i32 : i32, i32
  }
  func.func @transform_1(%arg0: i32) -> (i32, i32) {
    %c0_i32 = arith.constant 0 : i32
    %c0_i32_0 = arith.constant 0 : i32
    %c0_i32_1 = arith.constant 0 : i32
    return %c0_i32, %c0_i32_0 : i32, i32
  }
  func.func @transform_2(%arg0: i32) -> (i32, i32) {
    %c0_i32 = arith.constant 0 : i32
    %c0_i32_0 = arith.constant 0 : i32
    %c0_i32_1 = arith.constant 0 : i32
    return %c0_i32, %c0_i32_0 : i32, i32
  }
  func.func @transform_3(%arg0: i32) -> (i32, i32) {
    %c0_i32 = arith.constant 0 : i32
    %c0_i32_0 = arith.constant 0 : i32
    %c0_i32_1 = arith.constant 0 : i32
    return %c0_i32, %c0_i32_0 : i32, i32
  }
  func.func @transform_4(%arg0: i32) -> (i32, i32) {
    %c0_i32 = arith.constant 0 : i32
    %c0_i32_0 = arith.constant 0 : i32
    %c0_i32_1 = arith.constant 0 : i32
    return %c0_i32, %c0_i32_0 : i32, i32
  }
  func.func @transform_5(%arg0: i32) -> (i32, i32) {
    %c0_i32 = arith.constant 0 : i32
    %c0_i32_0 = arith.constant 0 : i32
    %c0_i32_1 = arith.constant 0 : i32
    return %c0_i32, %c0_i32_0 : i32, i32
  }
  func.func @transform_6(%arg0: i32) -> (i32, i32) {
    %c0_i32 = arith.constant 0 : i32
    %c0_i32_0 = arith.constant 0 : i32
    %c0_i32_1 = arith.constant 0 : i32
    return %c0_i32, %c0_i32_0 : i32, i32
  }
  func.func @transform_7(%arg0: i32) -> (i32, i32) {
    %c0_i32 = arith.constant 0 : i32
    %c0_i32_0 = arith.constant 0 : i32
    return %arg0, %c0_i32 : i32, i32
  }
}

</mosaic_0001>

<llo_original>
// kernel: mlp_forward.1
$region0: #{mlp_forward.1}
  #allocation0 [shape = 'u32[]', space=smem, size = 0x4, offset = 0x4, fixed_abs, tag = 'smem constant byte address 0x4 - core index']
  #allocation1 [shape = 'u32[144,128]{1,0:T(1,128)}', space=vmem, size = 0x12000, scoped, tag = 'internal scratch']
  %s0 = inlined_call_operand.vmem [shape: bf16[256,784], index: 0, kind: input, shape index: {}]
  %s1 = inlined_call_operand.vmem [shape: bf16[784,128], index: 1, kind: input, shape index: {}]
  %s2 = inlined_call_operand.vmem [shape: f32[1,128], index: 2, kind: input, shape index: {}]
  %s3 = inlined_call_operand.vmem [shape: bf16[128,128], index: 3, kind: input, shape index: {}]
  %s4 = inlined_call_operand.vmem [shape: f32[1,128], index: 4, kind: input, shape index: {}]
  %s5 = inlined_call_operand.vmem [shape: bf16[128,128], index: 5, kind: input, shape index: {}]
  %s6 = inlined_call_operand.vmem [shape: f32[1,128], index: 6, kind: input, shape index: {}]
  %s7 = inlined_call_operand.vmem [shape: f32[256,128], index: 7, kind: output, shape index: {}]
  %s8 = sld [smem:[#allocation0]]
  $region38: #{mlp_forward.1} parent=0
    _
  %s10 = ssub.s32 1, %s8
  %s11 = scalar_select 0, %s10, %s8
  // Predicated region
  $region2: #{mlp_forward.1} parent=0 // pred_check
    _
  $region3: #{mlp_forward.1} parent=0 // pred_check_branch
    %13 = sbr.rel (0) target = $region5
  $region4: #{mlp_forward.1} parent=0 // pred_region
    _
  $region5: #{mlp_forward.1} parent=0 // pred_fallthru
    _
  // Predicated region
  $region6: #{mlp_forward.1} parent=0 // pred_check
    _
  $region7: #{mlp_forward.1} parent=0 // pred_check_branch
    %15 = sbr.rel (0) target = $region9
  $region8: #{mlp_forward.1} parent=0 // pred_region
    _
  $region9: #{mlp_forward.1} parent=0 // pred_fallthru
    _
  // Predicated region
  $region10: #{mlp_forward.1} parent=0 // pred_check
    _
  $region11: #{mlp_forward.1} parent=0 // pred_check_branch
    %17 = sbr.rel (0) target = $region13
  $region12: #{mlp_forward.1} parent=0 // pred_region
    _
  $region13: #{mlp_forward.1} parent=0 // pred_fallthru
    _
  // Predicated region
  $region14: #{mlp_forward.1} parent=0 // pred_check
    _
  $region15: #{mlp_forward.1} parent=0 // pred_check_branch
    %19 = sbr.rel (0) target = $region17
  $region16: #{mlp_forward.1} parent=0 // pred_region
    _
  $region17: #{mlp_forward.1} parent=0 // pred_fallthru
    _
  // Predicated region
  $region18: #{mlp_forward.1} parent=0 // pred_check
    _
  $region19: #{mlp_forward.1} parent=0 // pred_check_branch
    %21 = sbr.rel (0) target = $region21
  $region20: #{mlp_forward.1} parent=0 // pred_region
    _
  $region21: #{mlp_forward.1} parent=0 // pred_fallthru
    _
  // Predicated region
  $region22: #{mlp_forward.1} parent=0 // pred_check
    _
  $region23: #{mlp_forward.1} parent=0 // pred_check_branch
    %23 = sbr.rel (0) target = $region25
  $region24: #{mlp_forward.1} parent=0 // pred_region
    _
  $region25: #{mlp_forward.1} parent=0 // pred_fallthru
    _
  // Predicated region
  $region26: #{mlp_forward.1} parent=0 // pred_check
    _
  $region27: #{mlp_forward.1} parent=0 // pred_check_branch
    %25 = sbr.rel (0) target = $region29
  $region28: #{mlp_forward.1} parent=0 // pred_region
    _
  $region29: #{mlp_forward.1} parent=0 // pred_fallthru
    _
  %v27 = vld [vmem:[%s0] sm:$0xff]
  %v28 = vld [vmem:[%s0 + $0x8] sm:$0xff]
  %v29 = vld [vmem:[%s0 + $0x10] sm:$0xff]
  %v30 = vld [vmem:[%s0 + $0x18] sm:$0xf]
  %v31 = vld [vmem:[%s0 + $0x1c] sm:$0xff]
  %v32 = vld [vmem:[%s0 + $0x24] sm:$0xff]
  %v33 = vld [vmem:[%s0 + $0x2c] sm:$0xff]
  %v34 = vld [vmem:[%s0 + $0x34] sm:$0xf]
  %v35 = vld [vmem:[%s0 + $0x38] sm:$0xff]
  %v36 = vld [vmem:[%s0 + $0x40] sm:$0xff]
  %v37 = vld [vmem:[%s0 + $0x48] sm:$0xff]
  %v38 = vld [vmem:[%s0 + $0x50] sm:$0xf]
  %v39 = vld [vmem:[%s0 + $0x54] sm:$0xff]
  %v40 = vld [vmem:[%s0 + $0x5c] sm:$0xff]
  %v41 = vld [vmem:[%s0 + $0x64] sm:$0xff]
  %v42 = vld [vmem:[%s0 + $0x6c] sm:$0xf]
  %v43 = vld [vmem:[%s0 + $0x70] sm:$0xff]
  %v44 = vld [vmem:[%s0 + $0x78] sm:$0xff]
  %v45 = vld [vmem:[%s0 + $0x80] sm:$0xff]
  %v46 = vld [vmem:[%s0 + $0x88] sm:$0xf]
  %v47 = vld [vmem:[%s0 + $0x8c] sm:$0xff]
  %v48 = vld [vmem:[%s0 + $0x94] sm:$0xff]
  %v49 = vld [vmem:[%s0 + $0x9c] sm:$0xff]
  %v50 = vld [vmem:[%s0 + $0xa4] sm:$0xf]
  %v51 = vld [vmem:[%s0 + $0xa8] sm:$0xff]
  %v52 = vld [vmem:[%s0 + $0xb0] sm:$0xff]
  %v53 = vld [vmem:[%s0 + $0xb8] sm:$0xff]
  %v54 = vld [vmem:[%s0 + $0xc0] sm:$0xf]
  %v55 = vld [vmem:[%s0 + $0xc4] sm:$0xff]
  %v56 = vld [vmem:[%s0 + $0xcc] sm:$0xff]
  %v57 = vld [vmem:[%s0 + $0xd4] sm:$0xff]
  %v58 = vld [vmem:[%s0 + $0xdc] sm:$0xf]
  %v59 = vld [vmem:[%s0 + $0xe0] sm:$0xff]
  %v60 = vld [vmem:[%s0 + $0xe8] sm:$0xff]
  %v61 = vld [vmem:[%s0 + $0xf0] sm:$0xff]
  %v62 = vld [vmem:[%s0 + $0xf8] sm:$0xf]
  %v63 = vld [vmem:[%s0 + $0xfc] sm:$0xff]
  %v64 = vld [vmem:[%s0 + $0x104] sm:$0xff]
  %v65 = vld [vmem:[%s0 + $0x10c] sm:$0xff]
  %v66 = vld [vmem:[%s0 + $0x114] sm:$0xf]
  %v67 = vld [vmem:[%s0 + $0x118] sm:$0xff]
  %v68 = vld [vmem:[%s0 + $0x120] sm:$0xff]
  %v69 = vld [vmem:[%s0 + $0x128] sm:$0xff]
  %v70 = vld [vmem:[%s0 + $0x130] sm:$0xf]
  %v71 = vld [vmem:[%s0 + $0x134] sm:$0xff]
  %v72 = vld [vmem:[%s0 + $0x13c] sm:$0xff]
  %v73 = vld [vmem:[%s0 + $0x144] sm:$0xff]
  %v74 = vld [vmem:[%s0 + $0x14c] sm:$0xf]
  %v75 = vld [vmem:[%s0 + $0x150] sm:$0xff]
  %v76 = vld [vmem:[%s0 + $0x158] sm:$0xff]
  %v77 = vld [vmem:[%s0 + $0x160] sm:$0xff]
  %v78 = vld [vmem:[%s0 + $0x168] sm:$0xf]
  %v79 = vld [vmem:[%s0 + $0x16c] sm:$0xff]
  %v80 = vld [vmem:[%s0 + $0x174] sm:$0xff]
  %v81 = vld [vmem:[%s0 + $0x17c] sm:$0xff]
  %v82 = vld [vmem:[%s0 + $0x184] sm:$0xf]
  %v83 = vld [vmem:[%s0 + $0x188] sm:$0xff]
  %v84 = vld [vmem:[%s0 + $0x190] sm:$0xff]
  %v85 = vld [vmem:[%s0 + $0x198] sm:$0xff]
  %v86 = vld [vmem:[%s0 + $0x1a0] sm:$0xf]
  %v87 = vld [vmem:[%s0 + $0x1a4] sm:$0xff]
  %v88 = vld [vmem:[%s0 + $0x1ac] sm:$0xff]
  %v89 = vld [vmem:[%s0 + $0x1b4] sm:$0xff]
  %v90 = vld [vmem:[%s0 + $0x1bc] sm:$0xf]
  %v91 = vld [vmem:[%s0 + $0x1c0] sm:$0xff]
  %v92 = vld [vmem:[%s0 + $0x1c8] sm:$0xff]
  %v93 = vld [vmem:[%s0 + $0x1d0] sm:$0xff]
  %v94 = vld [vmem:[%s0 + $0x1d8] sm:$0xf]
  %v95 = vld [vmem:[%s0 + $0x1dc] sm:$0xff]
  %v96 = vld [vmem:[%s0 + $0x1e4] sm:$0xff]
  %v97 = vld [vmem:[%s0 + $0x1ec] sm:$0xff]
  %v98 = vld [vmem:[%s0 + $0x1f4] sm:$0xf]
  %v99 = vld [vmem:[%s0 + $0x1f8] sm:$0xff]
  %v100 = vld [vmem:[%s0 + $0x200] sm:$0xff]
  %v101 = vld [vmem:[%s0 + $0x208] sm:$0xff]
  %v102 = vld [vmem:[%s0 + $0x210] sm:$0xf]
  %v103 = vld [vmem:[%s0 + $0x214] sm:$0xff]
  %v104 = vld [vmem:[%s0 + $0x21c] sm:$0xff]
  %v105 = vld [vmem:[%s0 + $0x224] sm:$0xff]
  %v106 = vld [vmem:[%s0 + $0x22c] sm:$0xf]
  %v107 = vld [vmem:[%s0 + $0x230] sm:$0xff]
  %v108 = vld [vmem:[%s0 + $0x238] sm:$0xff]
  %v109 = vld [vmem:[%s0 + $0x240] sm:$0xff]
  %v110 = vld [vmem:[%s0 + $0x248] sm:$0xf]
  %v111 = vld [vmem:[%s0 + $0x24c] sm:$0xff]
  %v112 = vld [vmem:[%s0 + $0x254] sm:$0xff]
  %v113 = vld [vmem:[%s0 + $0x25c] sm:$0xff]
  %v114 = vld [vmem:[%s0 + $0x264] sm:$0xf]
  %v115 = vld [vmem:[%s0 + $0x268] sm:$0xff]
  %v116 = vld [vmem:[%s0 + $0x270] sm:$0xff]
  %v117 = vld [vmem:[%s0 + $0x278] sm:$0xff]
  %v118 = vld [vmem:[%s0 + $0x280] sm:$0xf]
  %v119 = vld [vmem:[%s0 + $0x284] sm:$0xff]
  %v120 = vld [vmem:[%s0 + $0x28c] sm:$0xff]
  %v121 = vld [vmem:[%s0 + $0x294] sm:$0xff]
  %v122 = vld [vmem:[%s0 + $0x29c] sm:$0xf]
  %v123 = vld [vmem:[%s0 + $0x2a0] sm:$0xff]
  %v124 = vld [vmem:[%s0 + $0x2a8] sm:$0xff]
  %v125 = vld [vmem:[%s0 + $0x2b0] sm:$0xff]
  %v126 = vld [vmem:[%s0 + $0x2b8] sm:$0xf]
  %v127 = vld [vmem:[%s0 + $0x2bc] sm:$0xff]
  %v128 = vld [vmem:[%s0 + $0x2c4] sm:$0xff]
  %v129 = vld [vmem:[%s0 + $0x2cc] sm:$0xff]
  %v130 = vld [vmem:[%s0 + $0x2d4] sm:$0xf]
  %v131 = vld [vmem:[%s0 + $0x2d8] sm:$0xff]
  %v132 = vld [vmem:[%s0 + $0x2e0] sm:$0xff]
  %v133 = vld [vmem:[%s0 + $0x2e8] sm:$0xff]
  %v134 = vld [vmem:[%s0 + $0x2f0] sm:$0xf]
  %v135 = vld [vmem:[%s0 + $0x2f4] sm:$0xff]
  %v136 = vld [vmem:[%s0 + $0x2fc] sm:$0xff]
  %v137 = vld [vmem:[%s0 + $0x304] sm:$0xff]
  %v138 = vld [vmem:[%s0 + $0x30c] sm:$0xf]
  %v139 = vld [vmem:[%s0 + $0x310] sm:$0xff]
  %v140 = vld [vmem:[%s0 + $0x318] sm:$0xff]
  %v141 = vld [vmem:[%s0 + $0x320] sm:$0xff]
  %v142 = vld [vmem:[%s0 + $0x328] sm:$0xf]
  %v143 = vld [vmem:[%s0 + $0x32c] sm:$0xff]
  %v144 = vld [vmem:[%s0 + $0x334] sm:$0xff]
  %v145 = vld [vmem:[%s0 + $0x33c] sm:$0xff]
  %v146 = vld [vmem:[%s0 + $0x344] sm:$0xf]
  %v147 = vld [vmem:[%s0 + $0x348] sm:$0xff]
  %v148 = vld [vmem:[%s0 + $0x350] sm:$0xff]
  %v149 = vld [vmem:[%s0 + $0x358] sm:$0xff]
  %v150 = vld [vmem:[%s0 + $0x360] sm:$0xf]
  %v151 = vld [vmem:[%s0 + $0x364] sm:$0xff]
  %v152 = vld [vmem:[%s0 + $0x36c] sm:$0xff]
  %v153 = vld [vmem:[%s0 + $0x374] sm:$0xff]
  %v154 = vld [vmem:[%s0 + $0x37c] sm:$0xf]
  %v155 = vld [vmem:[%s1] sm:$0xf]
  %v156 = vld [vmem:[%s1 + $0x4] sm:$0xf]
  %v157 = vld [vmem:[%s1 + $0x8] sm:$0xf]
  %v158 = vld [vmem:[%s1 + $0xc] sm:$0xf]
  %v159 = vld [vmem:[%s1 + $0x10] sm:$0xf]
  %v160 = vld [vmem:[%s1 + $0x14] sm:$0xf]
  %v161 = vld [vmem:[%s1 + $0x18] sm:$0xf]
  %v162 = vld [vmem:[%s1 + $0x1c] sm:$0xf]
  %v163 = vld [vmem:[%s1 + $0x20] sm:$0xf]
  %v164 = vld [vmem:[%s1 + $0x24] sm:$0xf]
  %v165 = vld [vmem:[%s1 + $0x28] sm:$0xf]
  %v166 = vld [vmem:[%s1 + $0x2c] sm:$0xf]
  %v167 = vld [vmem:[%s1 + $0x30] sm:$0xf]
  %v168 = vld [vmem:[%s1 + $0x34] sm:$0xf]
  %v169 = vld [vmem:[%s1 + $0x38] sm:$0xf]
  %v170 = vld [vmem:[%s1 + $0x3c] sm:$0xf]
  %v171 = vld [vmem:[%s1 + $0x40] sm:$0xf]
  %v172 = vld [vmem:[%s1 + $0x44] sm:$0xf]
  %v173 = vld [vmem:[%s1 + $0x48] sm:$0xf]
  %v174 = vld [vmem:[%s1 + $0x4c] sm:$0xf]
  %v175 = vld [vmem:[%s1 + $0x50] sm:$0xf]
  %v176 = vld [vmem:[%s1 + $0x54] sm:$0xf]
  %v177 = vld [vmem:[%s1 + $0x58] sm:$0xf]
  %v178 = vld [vmem:[%s1 + $0x5c] sm:$0xf]
  %v179 = vld [vmem:[%s1 + $0x60] sm:$0xf]
  %v180 = vld [vmem:[%s1 + $0x64] sm:$0xf]
  %v181 = vld [vmem:[%s1 + $0x68] sm:$0xf]
  %v182 = vld [vmem:[%s1 + $0x6c] sm:$0xf]
  %v183 = vld [vmem:[%s1 + $0x70] sm:$0xf]
  %v184 = vld [vmem:[%s1 + $0x74] sm:$0xf]
  %v185 = vld [vmem:[%s1 + $0x78] sm:$0xf]
  %v186 = vld [vmem:[%s1 + $0x7c] sm:$0xf]
  %v187 = vld [vmem:[%s1 + $0x80] sm:$0xf]
  %v188 = vld [vmem:[%s1 + $0x84] sm:$0xf]
  %v189 = vld [vmem:[%s1 + $0x88] sm:$0xf]
  %v190 = vld [vmem:[%s1 + $0x8c] sm:$0xf]
  %v191 = vld [vmem:[%s1 + $0x90] sm:$0xf]
  %v192 = vld [vmem:[%s1 + $0x94] sm:$0xf]
  %v193 = vld [vmem:[%s1 + $0x98] sm:$0xf]
  %v194 = vld [vmem:[%s1 + $0x9c] sm:$0xf]
  %v195 = vld [vmem:[%s1 + $0xa0] sm:$0xf]
  %v196 = vld [vmem:[%s1 + $0xa4] sm:$0xf]
  %v197 = vld [vmem:[%s1 + $0xa8] sm:$0xf]
  %v198 = vld [vmem:[%s1 + $0xac] sm:$0xf]
  %v199 = vld [vmem:[%s1 + $0xb0] sm:$0xf]
  %v200 = vld [vmem:[%s1 + $0xb4] sm:$0xf]
  %v201 = vld [vmem:[%s1 + $0xb8] sm:$0xf]
  %v202 = vld [vmem:[%s1 + $0xbc] sm:$0xf]
  %v203 = vld [vmem:[%s1 + $0xc0] sm:$0xf]
  %v204 = vld [vmem:[%s1 + $0xc4] sm:$0xf]
  %v205 = vld [vmem:[%s1 + $0xc8] sm:$0xf]
  %v206 = vld [vmem:[%s1 + $0xcc] sm:$0xf]
  %v207 = vld [vmem:[%s1 + $0xd0] sm:$0xf]
  %v208 = vld [vmem:[%s1 + $0xd4] sm:$0xf]
  %v209 = vld [vmem:[%s1 + $0xd8] sm:$0xf]
  %v210 = vld [vmem:[%s1 + $0xdc] sm:$0xf]
  %v211 = vld [vmem:[%s1 + $0xe0] sm:$0xf]
  %v212 = vld [vmem:[%s1 + $0xe4] sm:$0xf]
  %v213 = vld [vmem:[%s1 + $0xe8] sm:$0xf]
  %v214 = vld [vmem:[%s1 + $0xec] sm:$0xf]
  %v215 = vld [vmem:[%s1 + $0xf0] sm:$0xf]
  %v216 = vld [vmem:[%s1 + $0xf4] sm:$0xf]
  %v217 = vld [vmem:[%s1 + $0xf8] sm:$0xf]
  %v218 = vld [vmem:[%s1 + $0xfc] sm:$0xf]
  %v219 = vld [vmem:[%s1 + $0x100] sm:$0xf]
  %v220 = vld [vmem:[%s1 + $0x104] sm:$0xf]
  %v221 = vld [vmem:[%s1 + $0x108] sm:$0xf]
  %v222 = vld [vmem:[%s1 + $0x10c] sm:$0xf]
  %v223 = vld [vmem:[%s1 + $0x110] sm:$0xf]
  %v224 = vld [vmem:[%s1 + $0x114] sm:$0xf]
  %v225 = vld [vmem:[%s1 + $0x118] sm:$0xf]
  %v226 = vld [vmem:[%s1 + $0x11c] sm:$0xf]
  %v227 = vld [vmem:[%s1 + $0x120] sm:$0xf]
  %v228 = vld [vmem:[%s1 + $0x124] sm:$0xf]
  %v229 = vld [vmem:[%s1 + $0x128] sm:$0xf]
  %v230 = vld [vmem:[%s1 + $0x12c] sm:$0xf]
  %v231 = vld [vmem:[%s1 + $0x130] sm:$0xf]
  %v232 = vld [vmem:[%s1 + $0x134] sm:$0xf]
  %v233 = vld [vmem:[%s1 + $0x138] sm:$0xf]
  %v234 = vld [vmem:[%s1 + $0x13c] sm:$0xf]
  %v235 = vld [vmem:[%s1 + $0x140] sm:$0xf]
  %v236 = vld [vmem:[%s1 + $0x144] sm:$0xf]
  %v237 = vld [vmem:[%s1 + $0x148] sm:$0xf]
  %v238 = vld [vmem:[%s1 + $0x14c] sm:$0xf]
  %v239 = vld [vmem:[%s1 + $0x150] sm:$0xf]
  %v240 = vld [vmem:[%s1 + $0x154] sm:$0xf]
  %v241 = vld [vmem:[%s1 + $0x158] sm:$0xf]
  %v242 = vld [vmem:[%s1 + $0x15c] sm:$0xf]
  %v243 = vld [vmem:[%s1 + $0x160] sm:$0xf]
  %v244 = vld [vmem:[%s1 + $0x164] sm:$0xf]
  %v245 = vld [vmem:[%s1 + $0x168] sm:$0xf]
  %v246 = vld [vmem:[%s1 + $0x16c] sm:$0xf]
  %v247 = vld [vmem:[%s1 + $0x170] sm:$0xf]
  %v248 = vld [vmem:[%s1 + $0x174] sm:$0xf]
  %v249 = vld [vmem:[%s1 + $0x178] sm:$0xf]
  %v250 = vld [vmem:[%s1 + $0x17c] sm:$0xf]
  %v251 = vld [vmem:[%s1 + $0x180] sm:$0xf]
  %v252 = vld [vmem:[%s1 + $0x184] sm:$0xf]
  %v253 = vld [vmem:[%s2] sm:$0x1]
  %v255 = vlaneseq
  %v256 = vshrl.u32 %v255, 7
  %v257 = vsub.s32 0, %v256
  %v258 = vrot.slane %v253, %v257
  %v388 = vunpack.c.l.b16 %v27
  %v389 = vunpack.c.h.b16 %v27
  %v390 = vunpack.c.l.b16 %v28
  %v391 = vunpack.c.h.b16 %v28
  %v392 = vunpack.c.l.b16 %v29
  %v393 = vunpack.c.h.b16 %v29
  %v394 = vunpack.c.l.b16 %v30
  %v395 = vunpack.c.l.b16 %v31
  %v396 = vunpack.c.h.b16 %v31
  %v397 = vunpack.c.l.b16 %v32
  %v398 = vunpack.c.h.b16 %v32
  %v399 = vunpack.c.l.b16 %v33
  %v400 = vunpack.c.h.b16 %v33
  %v401 = vunpack.c.l.b16 %v34
  %v402 = vunpack.c.l.b16 %v35
  %v403 = vunpack.c.h.b16 %v35
  %v404 = vunpack.c.l.b16 %v36
  %v405 = vunpack.c.h.b16 %v36
  %v406 = vunpack.c.l.b16 %v37
  %v407 = vunpack.c.h.b16 %v37
  %v408 = vunpack.c.l.b16 %v38
  %v409 = vunpack.c.l.b16 %v39
  %v410 = vunpack.c.h.b16 %v39
  %v411 = vunpack.c.l.b16 %v40
  %v412 = vunpack.c.h.b16 %v40
  %v413 = vunpack.c.l.b16 %v41
  %v414 = vunpack.c.h.b16 %v41
  %v415 = vunpack.c.l.b16 %v42
  %v416 = vunpack.c.l.b16 %v43
  %v417 = vunpack.c.h.b16 %v43
  %v418 = vunpack.c.l.b16 %v44
  %v419 = vunpack.c.h.b16 %v44
  %v420 = vunpack.c.l.b16 %v45
  %v421 = vunpack.c.h.b16 %v45
  %v422 = vunpack.c.l.b16 %v46
  %v423 = vunpack.c.l.b16 %v47
  %v424 = vunpack.c.h.b16 %v47
  %v425 = vunpack.c.l.b16 %v48
  %v426 = vunpack.c.h.b16 %v48
  %v427 = vunpack.c.l.b16 %v49
  %v428 = vunpack.c.h.b16 %v49
  %v429 = vunpack.c.l.b16 %v50
  %v430 = vunpack.c.l.b16 %v51
  %v431 = vunpack.c.h.b16 %v51
  %v432 = vunpack.c.l.b16 %v52
  %v433 = vunpack.c.h.b16 %v52
  %v434 = vunpack.c.l.b16 %v53
  %v435 = vunpack.c.h.b16 %v53
  %v436 = vunpack.c.l.b16 %v54
  %v437 = vunpack.c.l.b16 %v55
  %v438 = vunpack.c.h.b16 %v55
  %v439 = vunpack.c.l.b16 %v56
  %v440 = vunpack.c.h.b16 %v56
  %v441 = vunpack.c.l.b16 %v57
  %v442 = vunpack.c.h.b16 %v57
  %v443 = vunpack.c.l.b16 %v58
  %v444 = vunpack.c.l.b16 %v59
  %v445 = vunpack.c.h.b16 %v59
  %v446 = vunpack.c.l.b16 %v60
  %v447 = vunpack.c.h.b16 %v60
  %v448 = vunpack.c.l.b16 %v61
  %v449 = vunpack.c.h.b16 %v61
  %v450 = vunpack.c.l.b16 %v62
  %v451 = vunpack.c.l.b16 %v63
  %v452 = vunpack.c.h.b16 %v63
  %v453 = vunpack.c.l.b16 %v64
  %v454 = vunpack.c.h.b16 %v64
  %v455 = vunpack.c.l.b16 %v65
  %v456 = vunpack.c.h.b16 %v65
  %v457 = vunpack.c.l.b16 %v66
  %v458 = vunpack.c.l.b16 %v67
  %v459 = vunpack.c.h.b16 %v67
  %v460 = vunpack.c.l.b16 %v68
  %v461 = vunpack.c.h.b16 %v68
  %v462 = vunpack.c.l.b16 %v69
  %v463 = vunpack.c.h.b16 %v69
  %v464 = vunpack.c.l.b16 %v70
  %v465 = vunpack.c.l.b16 %v71
  %v466 = vunpack.c.h.b16 %v71
  %v467 = vunpack.c.l.b16 %v72
  %v468 = vunpack.c.h.b16 %v72
  %v469 = vunpack.c.l.b16 %v73
  %v470 = vunpack.c.h.b16 %v73
  %v471 = vunpack.c.l.b16 %v74
  %v472 = vunpack.c.l.b16 %v75
  %v473 = vunpack.c.h.b16 %v75
  %v474 = vunpack.c.l.b16 %v76
  %v475 = vunpack.c.h.b16 %v76
  %v476 = vunpack.c.l.b16 %v77
  %v477 = vunpack.c.h.b16 %v77
  %v478 = vunpack.c.l.b16 %v78
  %v479 = vunpack.c.l.b16 %v79
  %v480 = vunpack.c.h.b16 %v79
  %v481 = vunpack.c.l.b16 %v80
  %v482 = vunpack.c.h.b16 %v80
  %v483 = vunpack.c.l.b16 %v81
  %v484 = vunpack.c.h.b16 %v81
  %v485 = vunpack.c.l.b16 %v82
  %v486 = vunpack.c.l.b16 %v83
  %v487 = vunpack.c.h.b16 %v83
  %v488 = vunpack.c.l.b16 %v84
  %v489 = vunpack.c.h.b16 %v84
  %v490 = vunpack.c.l.b16 %v85
  %v491 = vunpack.c.h.b16 %v85
  %v492 = vunpack.c.l.b16 %v86
  %v493 = vunpack.c.l.b16 %v87
  %v494 = vunpack.c.h.b16 %v87
  %v495 = vunpack.c.l.b16 %v88
  %v496 = vunpack.c.h.b16 %v88
  %v497 = vunpack.c.l.b16 %v89
  %v498 = vunpack.c.h.b16 %v89
  %v499 = vunpack.c.l.b16 %v90
  %v500 = vunpack.c.l.b16 %v91
  %v501 = vunpack.c.h.b16 %v91
  %v502 = vunpack.c.l.b16 %v92
  %v503 = vunpack.c.h.b16 %v92
  %v504 = vunpack.c.l.b16 %v93
  %v505 = vunpack.c.h.b16 %v93
  %v506 = vunpack.c.l.b16 %v94
  %v507 = vunpack.c.l.b16 %v95
  %v508 = vunpack.c.h.b16 %v95
  %v509 = vunpack.c.l.b16 %v96
  %v510 = vunpack.c.h.b16 %v96
  %v511 = vunpack.c.l.b16 %v97
  %v512 = vunpack.c.h.b16 %v97
  %v513 = vunpack.c.l.b16 %v98
  %v514 = vunpack.c.l.b16 %v99
  %v515 = vunpack.c.h.b16 %v99
  %v516 = vunpack.c.l.b16 %v100
  %v517 = vunpack.c.h.b16 %v100
  %v518 = vunpack.c.l.b16 %v101
  %v519 = vunpack.c.h.b16 %v101
  %v520 = vunpack.c.l.b16 %v102
  %v521 = vunpack.c.l.b16 %v103
  %v522 = vunpack.c.h.b16 %v103
  %v523 = vunpack.c.l.b16 %v104
  %v524 = vunpack.c.h.b16 %v104
  %v525 = vunpack.c.l.b16 %v105
  %v526 = vunpack.c.h.b16 %v105
  %v527 = vunpack.c.l.b16 %v106
  %v528 = vunpack.c.l.b16 %v107
  %v529 = vunpack.c.h.b16 %v107
  %v530 = vunpack.c.l.b16 %v108
  %v531 = vunpack.c.h.b16 %v108
  %v532 = vunpack.c.l.b16 %v109
  %v533 = vunpack.c.h.b16 %v109
  %v534 = vunpack.c.l.b16 %v110
  %v535 = vunpack.c.l.b16 %v111
  %v536 = vunpack.c.h.b16 %v111
  %v537 = vunpack.c.l.b16 %v112
  %v538 = vunpack.c.h.b16 %v112
  %v539 = vunpack.c.l.b16 %v113
  %v540 = vunpack.c.h.b16 %v113
  %v541 = vunpack.c.l.b16 %v114
  %v542 = vunpack.c.l.b16 %v115
  %v543 = vunpack.c.h.b16 %v115
  %v544 = vunpack.c.l.b16 %v116
  %v545 = vunpack.c.h.b16 %v116
  %v546 = vunpack.c.l.b16 %v117
  %v547 = vunpack.c.h.b16 %v117
  %v548 = vunpack.c.l.b16 %v118
  %v549 = vunpack.c.l.b16 %v119
  %v550 = vunpack.c.h.b16 %v119
  %v551 = vunpack.c.l.b16 %v120
  %v552 = vunpack.c.h.b16 %v120
  %v553 = vunpack.c.l.b16 %v121
  %v554 = vunpack.c.h.b16 %v121
  %v555 = vunpack.c.l.b16 %v122
  %v556 = vunpack.c.l.b16 %v123
  %v557 = vunpack.c.h.b16 %v123
  %v558 = vunpack.c.l.b16 %v124
  %v559 = vunpack.c.h.b16 %v124
  %v560 = vunpack.c.l.b16 %v125
  %v561 = vunpack.c.h.b16 %v125
  %v562 = vunpack.c.l.b16 %v126
  %v563 = vunpack.c.l.b16 %v127
  %v564 = vunpack.c.h.b16 %v127
  %v565 = vunpack.c.l.b16 %v128
  %v566 = vunpack.c.h.b16 %v128
  %v567 = vunpack.c.l.b16 %v129
  %v568 = vunpack.c.h.b16 %v129
  %v569 = vunpack.c.l.b16 %v130
  %v570 = vunpack.c.l.b16 %v131
  %v571 = vunpack.c.h.b16 %v131
  %v572 = vunpack.c.l.b16 %v132
  %v573 = vunpack.c.h.b16 %v132
  %v574 = vunpack.c.l.b16 %v133
  %v575 = vunpack.c.h.b16 %v133
  %v576 = vunpack.c.l.b16 %v134
  %v577 = vunpack.c.l.b16 %v135
  %v578 = vunpack.c.h.b16 %v135
  %v579 = vunpack.c.l.b16 %v136
  %v580 = vunpack.c.h.b16 %v136
  %v581 = vunpack.c.l.b16 %v137
  %v582 = vunpack.c.h.b16 %v137
  %v583 = vunpack.c.l.b16 %v138
  %v584 = vunpack.c.l.b16 %v139
  %v585 = vunpack.c.h.b16 %v139
  %v586 = vunpack.c.l.b16 %v140
  %v587 = vunpack.c.h.b16 %v140
  %v588 = vunpack.c.l.b16 %v141
  %v589 = vunpack.c.h.b16 %v141
  %v590 = vunpack.c.l.b16 %v142
  %v591 = vunpack.c.l.b16 %v143
  %v592 = vunpack.c.h.b16 %v143
  %v593 = vunpack.c.l.b16 %v144
  %v594 = vunpack.c.h.b16 %v144
  %v595 = vunpack.c.l.b16 %v145
  %v596 = vunpack.c.h.b16 %v145
  %v597 = vunpack.c.l.b16 %v146
  %v598 = vunpack.c.l.b16 %v147
  %v599 = vunpack.c.h.b16 %v147
  %v600 = vunpack.c.l.b16 %v148
  %v601 = vunpack.c.h.b16 %v148
  %v602 = vunpack.c.l.b16 %v149
  %v603 = vunpack.c.h.b16 %v149
  %v604 = vunpack.c.l.b16 %v150
  %v605 = vunpack.c.l.b16 %v151
  %v606 = vunpack.c.h.b16 %v151
  %v607 = vunpack.c.l.b16 %v152
  %v608 = vunpack.c.h.b16 %v152
  %v609 = vunpack.c.l.b16 %v153
  %v610 = vunpack.c.h.b16 %v153
  %v611 = vunpack.c.l.b16 %v154
  %v612 = vpack.c.b16 %v395, %v388
  %v613 = vpack.c.b16 %v396, %v389
  %v614 = vpack.c.b16 %v397, %v390
  %v615 = vpack.c.b16 %v398, %v391
  %v616 = vpack.c.b16 %v399, %v392
  %v617 = vpack.c.b16 %v400, %v393
  %v618 = vpack.c.b16 %v401, %v394
  %v619 = vpack.c.b16 %v409, %v402
  %v620 = vpack.c.b16 %v410, %v403
  %v621 = vpack.c.b16 %v411, %v404
  %v622 = vpack.c.b16 %v412, %v405
  %v623 = vpack.c.b16 %v413, %v406
  %v624 = vpack.c.b16 %v414, %v407
  %v625 = vpack.c.b16 %v415, %v408
  %v626 = vpack.c.b16 %v423, %v416
  %v627 = vpack.c.b16 %v424, %v417
  %v628 = vpack.c.b16 %v425, %v418
  %v629 = vpack.c.b16 %v426, %v419
  %v630 = vpack.c.b16 %v427, %v420
  %v631 = vpack.c.b16 %v428, %v421
  %v632 = vpack.c.b16 %v429, %v422
  %v633 = vpack.c.b16 %v437, %v430
  %v634 = vpack.c.b16 %v438, %v431
  %v635 = vpack.c.b16 %v439, %v432
  %v636 = vpack.c.b16 %v440, %v433
  %v637 = vpack.c.b16 %v441, %v434
  %v638 = vpack.c.b16 %v442, %v435
  %v639 = vpack.c.b16 %v443, %v436
  %v640 = vpack.c.b16 %v451, %v444
  %v641 = vpack.c.b16 %v452, %v445
  %v642 = vpack.c.b16 %v453, %v446
  %v643 = vpack.c.b16 %v454, %v447
  %v644 = vpack.c.b16 %v455, %v448
  %v645 = vpack.c.b16 %v456, %v449
  %v646 = vpack.c.b16 %v457, %v450
  %v647 = vpack.c.b16 %v465, %v458
  %v648 = vpack.c.b16 %v466, %v459
  %v649 = vpack.c.b16 %v467, %v460
  %v650 = vpack.c.b16 %v468, %v461
  %v651 = vpack.c.b16 %v469, %v462
  %v652 = vpack.c.b16 %v470, %v463
  %v653 = vpack.c.b16 %v471, %v464
  %v654 = vpack.c.b16 %v479, %v472
  %v655 = vpack.c.b16 %v480, %v473
  %v656 = vpack.c.b16 %v481, %v474
  %v657 = vpack.c.b16 %v482, %v475
  %v658 = vpack.c.b16 %v483, %v476
  %v659 = vpack.c.b16 %v484, %v477
  %v660 = vpack.c.b16 %v485, %v478
  %v661 = vpack.c.b16 %v493, %v486
  %v662 = vpack.c.b16 %v494, %v487
  %v663 = vpack.c.b16 %v495, %v488
  %v664 = vpack.c.b16 %v496, %v489
  %v665 = vpack.c.b16 %v497, %v490
  %v666 = vpack.c.b16 %v498, %v491
  %v667 = vpack.c.b16 %v499, %v492
  %v668 = vpack.c.b16 %v507, %v500
  %v669 = vpack.c.b16 %v508, %v501
  %v670 = vpack.c.b16 %v509, %v502
  %v671 = vpack.c.b16 %v510, %v503
  %v672 = vpack.c.b16 %v511, %v504
  %v673 = vpack.c.b16 %v512, %v505
  %v674 = vpack.c.b16 %v513, %v506
  %v675 = vpack.c.b16 %v521, %v514
  %v676 = vpack.c.b16 %v522, %v515
  %v677 = vpack.c.b16 %v523, %v516
  %v678 = vpack.c.b16 %v524, %v517
  %v679 = vpack.c.b16 %v525, %v518
  %v680 = vpack.c.b16 %v526, %v519
  %v681 = vpack.c.b16 %v527, %v520
  %v682 = vpack.c.b16 %v535, %v528
  %v683 = vpack.c.b16 %v536, %v529
  %v684 = vpack.c.b16 %v537, %v530
  %v685 = vpack.c.b16 %v538, %v531
  %v686 = vpack.c.b16 %v539, %v532
  %v687 = vpack.c.b16 %v540, %v533
  %v688 = vpack.c.b16 %v541, %v534
  %v689 = vpack.c.b16 %v549, %v542
  %v690 = vpack.c.b16 %v550, %v543
  %v691 = vpack.c.b16 %v551, %v544
  %v692 = vpack.c.b16 %v552, %v545
  %v693 = vpack.c.b16 %v553, %v546
  %v694 = vpack.c.b16 %v554, %v547
  %v695 = vpack.c.b16 %v555, %v548
  %v696 = vpack.c.b16 %v563, %v556
  %v697 = vpack.c.b16 %v564, %v557
  %v698 = vpack.c.b16 %v565, %v558
  %v699 = vpack.c.b16 %v566, %v559
  %v700 = vpack.c.b16 %v567, %v560
  %v701 = vpack.c.b16 %v568, %v561
  %v702 = vpack.c.b16 %v569, %v562
  %v703 = vpack.c.b16 %v577, %v570
  %v704 = vpack.c.b16 %v578, %v571
  %v705 = vpack.c.b16 %v579, %v572
  %v706 = vpack.c.b16 %v580, %v573
  %v707 = vpack.c.b16 %v581, %v574
  %v708 = vpack.c.b16 %v582, %v575
  %v709 = vpack.c.b16 %v583, %v576
  %v710 = vpack.c.b16 %v591, %v584
  %v711 = vpack.c.b16 %v592, %v585
  %v712 = vpack.c.b16 %v593, %v586
  %v713 = vpack.c.b16 %v594, %v587
  %v714 = vpack.c.b16 %v595, %v588
  %v715 = vpack.c.b16 %v596, %v589
  %v716 = vpack.c.b16 %v597, %v590
  %v717 = vpack.c.b16 %v605, %v598
  %v718 = vpack.c.b16 %v606, %v599
  %v719 = vpack.c.b16 %v607, %v600
  %v720 = vpack.c.b16 %v608, %v601
  %v721 = vpack.c.b16 %v609, %v602
  %v722 = vpack.c.b16 %v610, %v603
  %v723 = vpack.c.b16 %v611, %v604
  %v918 = vunpack.c.l.b16 %v155
  %v919 = vunpack.c.l.b16 %v156
  %v920 = vunpack.c.l.b16 %v157
  %v921 = vunpack.c.l.b16 %v158
  %v922 = vunpack.c.l.b16 %v159
  %v923 = vunpack.c.l.b16 %v160
  %v924 = vunpack.c.l.b16 %v161
  %v925 = vunpack.c.l.b16 %v162
  %v926 = vunpack.c.l.b16 %v163
  %v927 = vunpack.c.l.b16 %v164
  %v928 = vunpack.c.l.b16 %v165
  %v929 = vunpack.c.l.b16 %v166
  %v930 = vunpack.c.l.b16 %v167
  %v931 = vunpack.c.l.b16 %v168
  %v932 = vunpack.c.l.b16 %v169
  %v933 = vunpack.c.l.b16 %v170
  %v934 = vunpack.c.l.b16 %v171
  %v935 = vunpack.c.l.b16 %v172
  %v936 = vunpack.c.l.b16 %v173
  %v937 = vunpack.c.l.b16 %v174
  %v938 = vunpack.c.l.b16 %v175
  %v939 = vunpack.c.l.b16 %v176
  %v940 = vunpack.c.l.b16 %v177
  %v941 = vunpack.c.l.b16 %v178
  %v942 = vunpack.c.l.b16 %v179
  %v943 = vunpack.c.l.b16 %v180
  %v944 = vunpack.c.l.b16 %v181
  %v945 = vunpack.c.l.b16 %v182
  %v946 = vunpack.c.l.b16 %v183
  %v947 = vunpack.c.l.b16 %v184
  %v948 = vunpack.c.l.b16 %v185
  %v949 = vunpack.c.l.b16 %v186
  %v950 = vunpack.c.l.b16 %v187
  %v951 = vunpack.c.l.b16 %v188
  %v952 = vunpack.c.l.b16 %v189
  %v953 = vunpack.c.l.b16 %v190
  %v954 = vunpack.c.l.b16 %v191
  %v955 = vunpack.c.l.b16 %v192
  %v956 = vunpack.c.l.b16 %v193
  %v957 = vunpack.c.l.b16 %v194
  %v958 = vunpack.c.l.b16 %v195
  %v959 = vunpack.c.l.b16 %v196
  %v960 = vunpack.c.l.b16 %v197
  %v961 = vunpack.c.l.b16 %v198
  %v962 = vunpack.c.l.b16 %v199
  %v963 = vunpack.c.l.b16 %v200
  %v964 = vunpack.c.l.b16 %v201
  %v965 = vunpack.c.l.b16 %v202
  %v966 = vunpack.c.l.b16 %v203
  %v967 = vunpack.c.l.b16 %v204
  %v968 = vunpack.c.l.b16 %v205
  %v969 = vunpack.c.l.b16 %v206
  %v970 = vunpack.c.l.b16 %v207
  %v971 = vunpack.c.l.b16 %v208
  %v972 = vunpack.c.l.b16 %v209
  %v973 = vunpack.c.l.b16 %v210
  %v974 = vunpack.c.l.b16 %v211
  %v975 = vunpack.c.l.b16 %v212
  %v976 = vunpack.c.l.b16 %v213
  %v977 = vunpack.c.l.b16 %v214
  %v978 = vunpack.c.l.b16 %v215
  %v979 = vunpack.c.l.b16 %v216
  %v980 = vunpack.c.l.b16 %v217
  %v981 = vunpack.c.l.b16 %v218
  %v982 = vunpack.c.l.b16 %v219
  %v983 = vunpack.c.l.b16 %v220
  %v984 = vunpack.c.l.b16 %v221
  %v985 = vunpack.c.l.b16 %v222
  %v986 = vunpack.c.l.b16 %v223
  %v987 = vunpack.c.l.b16 %v224
  %v988 = vunpack.c.l.b16 %v225
  %v989 = vunpack.c.l.b16 %v226
  %v990 = vunpack.c.l.b16 %v227
  %v991 = vunpack.c.l.b16 %v228
  %v992 = vunpack.c.l.b16 %v229
  %v993 = vunpack.c.l.b16 %v230
  %v994 = vunpack.c.l.b16 %v231
  %v995 = vunpack.c.l.b16 %v232
  %v996 = vunpack.c.l.b16 %v233
  %v997 = vunpack.c.l.b16 %v234
  %v998 = vunpack.c.l.b16 %v235
  %v999 = vunpack.c.l.b16 %v236
  %v1000 = vunpack.c.l.b16 %v237
  %v1001 = vunpack.c.l.b16 %v238
  %v1002 = vunpack.c.l.b16 %v239
  %v1003 = vunpack.c.l.b16 %v240
  %v1004 = vunpack.c.l.b16 %v241
  %v1005 = vunpack.c.l.b16 %v242
  %v1006 = vunpack.c.l.b16 %v243
  %v1007 = vunpack.c.l.b16 %v244
  %v1008 = vunpack.c.l.b16 %v245
  %v1009 = vunpack.c.l.b16 %v246
  %v1010 = vunpack.c.l.b16 %v247
  %v1011 = vunpack.c.l.b16 %v248
  %v1012 = vunpack.c.l.b16 %v249
  %v1013 = vunpack.c.l.b16 %v250
  %v1014 = vunpack.c.l.b16 %v251
  %v1015 = vunpack.c.l.b16 %v252
  %v1016 = vpack.c.b16 %v919, %v918
  %v1017 = vpack.c.b16 %v921, %v920
  %v1018 = vpack.c.b16 %v923, %v922
  %v1019 = vpack.c.b16 %v925, %v924
  %v1020 = vpack.c.b16 %v927, %v926
  %v1021 = vpack.c.b16 %v929, %v928
  %v1022 = vpack.c.b16 %v931, %v930
  %v1023 = vpack.c.b16 %v933, %v932
  %v1024 = vpack.c.b16 %v935, %v934
  %v1025 = vpack.c.b16 %v937, %v936
  %v1026 = vpack.c.b16 %v939, %v938
  %v1027 = vpack.c.b16 %v941, %v940
  %v1028 = vpack.c.b16 %v943, %v942
  %v1029 = vpack.c.b16 %v945, %v944
  %v1030 = vpack.c.b16 %v947, %v946
  %v1031 = vpack.c.b16 %v949, %v948
  %v1032 = vpack.c.b16 %v951, %v950
  %v1033 = vpack.c.b16 %v953, %v952
  %v1034 = vpack.c.b16 %v955, %v954
  %v1035 = vpack.c.b16 %v957, %v956
  %v1036 = vpack.c.b16 %v959, %v958
  %v1037 = vpack.c.b16 %v961, %v960
  %v1038 = vpack.c.b16 %v963, %v962
  %v1039 = vpack.c.b16 %v965, %v964
  %v1040 = vpack.c.b16 %v967, %v966
  %v1041 = vpack.c.b16 %v969, %v968
  %v1042 = vpack.c.b16 %v971, %v970
  %v1043 = vpack.c.b16 %v973, %v972
  %v1044 = vpack.c.b16 %v975, %v974
  %v1045 = vpack.c.b16 %v977, %v976
  %v1046 = vpack.c.b16 %v979, %v978
  %v1047 = vpack.c.b16 %v981, %v980
  %v1048 = vpack.c.b16 %v983, %v982
  %v1049 = vpack.c.b16 %v985, %v984
  %v1050 = vpack.c.b16 %v987, %v986
  %v1051 = vpack.c.b16 %v989, %v988
  %v1052 = vpack.c.b16 %v991, %v990
  %v1053 = vpack.c.b16 %v993, %v992
  %v1054 = vpack.c.b16 %v995, %v994
  %v1055 = vpack.c.b16 %v997, %v996
  %v1056 = vpack.c.b16 %v999, %v998
  %v1057 = vpack.c.b16 %v1001, %v1000
  %v1058 = vpack.c.b16 %v1003, %v1002
  %v1059 = vpack.c.b16 %v1005, %v1004
  %v1060 = vpack.c.b16 %v1007, %v1006
  %v1061 = vpack.c.b16 %v1009, %v1008
  %v1062 = vpack.c.b16 %v1011, %v1010
  %v1063 = vpack.c.b16 %v1013, %v1012
  %v1064 = vpack.c.b16 %v1015, %v1014
  %vm1114 = vcmask 130048
  %v1116 = vsel %vm1114, %v618, 0
  %v1119 = vsel %vm1114, %v625, 0
  %v1122 = vsel %vm1114, %v632, 0
  %v1125 = vsel %vm1114, %v639, 0
  %v1128 = vsel %vm1114, %v646, 0
  %v1131 = vsel %vm1114, %v653, 0
  %v1134 = vsel %vm1114, %v660, 0
  %v1137 = vsel %vm1114, %v667, 0
  %v1140 = vsel %vm1114, %v674, 0
  %v1143 = vsel %vm1114, %v681, 0
  %v1146 = vsel %vm1114, %v688, 0
  %v1149 = vsel %vm1114, %v695, 0
  %v1152 = vsel %vm1114, %v702, 0
  %v1155 = vsel %vm1114, %v709, 0
  %v1158 = vsel %vm1114, %v716, 0
  %v1161 = vsel %vm1114, %v723, 0
  %1163 = vmatprep.subr.bf16.mxu0 0
  %1164 = vmatpush1.bf16.msra.mxu0 %v1023
  %1165 = vmatprep.subr.bf16.mxu0 0
  %1166 = vmatpush1.bf16.msra.mxu0 %v1022
  %1167 = vmatprep.subr.bf16.mxu0 0
  %1168 = vmatpush1.bf16.msra.mxu0 %v1021
  %1169 = vmatprep.subr.bf16.mxu0 0
  %1170 = vmatpush1.bf16.msra.mxu0 %v1020
  %1171 = vmatprep.subr.bf16.mxu0 0
  %1172 = vmatpush1.bf16.msra.mxu0 %v1019
  %1173 = vmatprep.subr.bf16.mxu0 0
  %1174 = vmatpush1.bf16.msra.mxu0 %v1018
  %1175 = vmatprep.subr.bf16.mxu0 0
  %1176 = vmatpush1.bf16.msra.mxu0 %v1017
  %1177 = vmatprep.subr.bf16.mxu0 0
  %1178 = vmatpush1.bf16.msra.mxu0 %v1016
  %1179 = vmatprep.subr.bf16.mxu0 0
  %1180 = vmatpush2.bf16.msra.mxu0 %v1031
  %1181 = vmatprep.subr.bf16.mxu0 0
  %1182 = vmatpush2.bf16.msra.mxu0 %v1030
  %1183 = vmatprep.subr.bf16.mxu0 0
  %1184 = vmatpush2.bf16.msra.mxu0 %v1029
  %1185 = vmatprep.subr.bf16.mxu0 0
  %1186 = vmatpush2.bf16.msra.mxu0 %v1028
  %1187 = vmatprep.subr.bf16.mxu0 0
  %1188 = vmatpush2.bf16.msra.mxu0 %v1027
  %1189 = vmatprep.subr.bf16.mxu0 0
  %1190 = vmatpush2.bf16.msra.mxu0 %v1026
  %1191 = vmatprep.subr.bf16.mxu0 0
  %1192 = vmatpush2.bf16.msra.mxu0 %v1025
  %1193 = vmatprep.subr.bf16.mxu0 0
  %1194 = vmatpush2.bf16.msra.mxu0 %v1024
  %1195 = vmatprep.mubr.bf16.mxu0 %v613
  %1196 = vmatmul.mubr.bf16.gmra.mxu0 %v612
  %v1197 = vpop.f32.mrf.mxu0
  %v1198 = vadd.f32 %v258, %v1197
  %v1199 = vpop.f32.mrf.mxu0
  %v1200 = vpop.f32.mrf.mxu0
  %v1201 = vadd.f32 %v258, %v1200
  %v1202 = vpop.f32.mrf.mxu0
  %1203 = vmatprep.mubr.bf16.mxu0 %v620
  %1204 = vmatmul.mubr.bf16.gmra.mxu0 %v619
  %v1205 = vpop.f32.mrf.mxu0
  %v1206 = vadd.f32 %v258, %v1205
  %v1207 = vpop.f32.mrf.mxu0
  %v1208 = vpop.f32.mrf.mxu0
  %v1209 = vadd.f32 %v258, %v1208
  %v1210 = vpop.f32.mrf.mxu0
  %1211 = vmatprep.mubr.bf16.mxu0 %v627
  %1212 = vmatmul.mubr.bf16.gmra.mxu0 %v626
  %v1213 = vpop.f32.mrf.mxu0
  %v1214 = vadd.f32 %v258, %v1213
  %v1215 = vpop.f32.mrf.mxu0
  %v1216 = vpop.f32.mrf.mxu0
  %v1217 = vadd.f32 %v258, %v1216
  %v1218 = vpop.f32.mrf.mxu0
  %1219 = vmatprep.mubr.bf16.mxu0 %v634
  %1220 = vmatmul.mubr.bf16.gmra.mxu0 %v633
  %v1221 = vpop.f32.mrf.mxu0
  %v1222 = vadd.f32 %v258, %v1221
  %v1223 = vpop.f32.mrf.mxu0
  %v1224 = vpop.f32.mrf.mxu0
  %v1225 = vadd.f32 %v258, %v1224
  %v1226 = vpop.f32.mrf.mxu0
  %1227 = vmatprep.mubr.bf16.mxu0 %v641
  %1228 = vmatmul.mubr.bf16.gmra.mxu0 %v640
  %v1229 = vpop.f32.mrf.mxu0
  %v1230 = vadd.f32 %v258, %v1229
  %v1231 = vpop.f32.mrf.mxu0
  %v1232 = vpop.f32.mrf.mxu0
  %v1233 = vadd.f32 %v258, %v1232
  %v1234 = vpop.f32.mrf.mxu0
  %1235 = vmatprep.mubr.bf16.mxu0 %v648
  %1236 = vmatmul.mubr.bf16.gmra.mxu0 %v647
  %v1237 = vpop.f32.mrf.mxu0
  %v1238 = vadd.f32 %v258, %v1237
  %v1239 = vpop.f32.mrf.mxu0
  %v1240 = vpop.f32.mrf.mxu0
  %v1241 = vadd.f32 %v258, %v1240
  %v1242 = vpop.f32.mrf.mxu0
  %1243 = vmatprep.mubr.bf16.mxu0 %v655
  %1244 = vmatmul.mubr.bf16.gmra.mxu0 %v654
  %v1245 = vpop.f32.mrf.mxu0
  %v1246 = vadd.f32 %v258, %v1245
  %v1247 = vpop.f32.mrf.mxu0
  %v1248 = vpop.f32.mrf.mxu0
  %v1249 = vadd.f32 %v258, %v1248
  %v1250 = vpop.f32.mrf.mxu0
  %1251 = vmatprep.mubr.bf16.mxu0 %v662
  %1252 = vmatmul.mubr.bf16.gmra.mxu0 %v661
  %v1253 = vpop.f32.mrf.mxu0
  %v1254 = vadd.f32 %v258, %v1253
  %v1255 = vpop.f32.mrf.mxu0
  %v1256 = vpop.f32.mrf.mxu0
  %v1257 = vadd.f32 %v258, %v1256
  %v1258 = vpop.f32.mrf.mxu0
  %1259 = vmatprep.mubr.bf16.mxu0 %v669
  %1260 = vmatmul.mubr.bf16.gmra.mxu0 %v668
  %v1261 = vpop.f32.mrf.mxu0
  %v1262 = vadd.f32 %v258, %v1261
  %v1263 = vpop.f32.mrf.mxu0
  %v1264 = vpop.f32.mrf.mxu0
  %v1265 = vadd.f32 %v258, %v1264
  %v1266 = vpop.f32.mrf.mxu0
  %1267 = vmatprep.mubr.bf16.mxu0 %v676
  %1268 = vmatmul.mubr.bf16.gmra.mxu0 %v675
  %v1269 = vpop.f32.mrf.mxu0
  %v1270 = vadd.f32 %v258, %v1269
  %v1271 = vpop.f32.mrf.mxu0
  %v1272 = vpop.f32.mrf.mxu0
  %v1273 = vadd.f32 %v258, %v1272
  %v1274 = vpop.f32.mrf.mxu0
  %1275 = vmatprep.mubr.bf16.mxu0 %v683
  %1276 = vmatmul.mubr.bf16.gmra.mxu0 %v682
  %v1277 = vpop.f32.mrf.mxu0
  %v1278 = vadd.f32 %v258, %v1277
  %v1279 = vpop.f32.mrf.mxu0
  %v1280 = vpop.f32.mrf.mxu0
  %v1281 = vadd.f32 %v258, %v1280
  %v1282 = vpop.f32.mrf.mxu0
  %1283 = vmatprep.mubr.bf16.mxu0 %v690
  %1284 = vmatmul.mubr.bf16.gmra.mxu0 %v689
  %v1285 = vpop.f32.mrf.mxu0
  %v1286 = vadd.f32 %v258, %v1285
  %v1287 = vpop.f32.mrf.mxu0
  %v1288 = vpop.f32.mrf.mxu0
  %v1289 = vadd.f32 %v258, %v1288
  %v1290 = vpop.f32.mrf.mxu0
  %1291 = vmatprep.mubr.bf16.mxu0 %v697
  %1292 = vmatmul.mubr.bf16.gmra.mxu0 %v696
  %v1293 = vpop.f32.mrf.mxu0
  %v1294 = vadd.f32 %v258, %v1293
  %v1295 = vpop.f32.mrf.mxu0
  %v1296 = vpop.f32.mrf.mxu0
  %v1297 = vadd.f32 %v258, %v1296
  %v1298 = vpop.f32.mrf.mxu0
  %1299 = vmatprep.mubr.bf16.mxu0 %v704
  %1300 = vmatmul.mubr.bf16.gmra.mxu0 %v703
  %v1301 = vpop.f32.mrf.mxu0
  %v1302 = vadd.f32 %v258, %v1301
  %v1303 = vpop.f32.mrf.mxu0
  %v1304 = vpop.f32.mrf.mxu0
  %v1305 = vadd.f32 %v258, %v1304
  %v1306 = vpop.f32.mrf.mxu0
  %1307 = vmatprep.mubr.bf16.mxu0 %v711
  %1308 = vmatmul.mubr.bf16.gmra.mxu0 %v710
  %v1309 = vpop.f32.mrf.mxu0
  %v1310 = vadd.f32 %v258, %v1309
  %v1311 = vpop.f32.mrf.mxu0
  %v1312 = vpop.f32.mrf.mxu0
  %v1313 = vadd.f32 %v258, %v1312
  %v1314 = vpop.f32.mrf.mxu0
  %1315 = vmatprep.mubr.bf16.mxu0 %v718
  %1316 = vmatmul.mubr.bf16.gmra.mxu0 %v717
  %v1317 = vpop.f32.mrf.mxu0
  %v1318 = vadd.f32 %v258, %v1317
  %v1319 = vpop.f32.mrf.mxu0
  %v1320 = vpop.f32.mrf.mxu0
  %v1321 = vadd.f32 %v258, %v1320
  %v1322 = vpop.f32.mrf.mxu0
  %1323 = vdwg.mxu0
  %1324 = vmatprep.subr.bf16.mxu0 0
  %1325 = vmatpush1.bf16.msra.mxu0 %v1039
  %1326 = vmatprep.subr.bf16.mxu0 0
  %1327 = vmatpush1.bf16.msra.mxu0 %v1038
  %1328 = vmatprep.subr.bf16.mxu0 0
  %1329 = vmatpush1.bf16.msra.mxu0 %v1037
  %1330 = vmatprep.subr.bf16.mxu0 0
  %1331 = vmatpush1.bf16.msra.mxu0 %v1036
  %1332 = vmatprep.subr.bf16.mxu0 0
  %1333 = vmatpush1.bf16.msra.mxu0 %v1035
  %1334 = vmatprep.subr.bf16.mxu0 0
  %1335 = vmatpush1.bf16.msra.mxu0 %v1034
  %1336 = vmatprep.subr.bf16.mxu0 0
  %1337 = vmatpush1.bf16.msra.mxu0 %v1033
  %1338 = vmatprep.subr.bf16.mxu0 0
  %1339 = vmatpush1.bf16.msra.mxu0 %v1032
  %1340 = vmatprep.subr.bf16.mxu0 0
  %1341 = vmatpush2.bf16.msra.mxu0 %v1047
  %1342 = vmatprep.subr.bf16.mxu0 0
  %1343 = vmatpush2.bf16.msra.mxu0 %v1046
  %1344 = vmatprep.subr.bf16.mxu0 0
  %1345 = vmatpush2.bf16.msra.mxu0 %v1045
  %1346 = vmatprep.subr.bf16.mxu0 0
  %1347 = vmatpush2.bf16.msra.mxu0 %v1044
  %1348 = vmatprep.subr.bf16.mxu0 0
  %1349 = vmatpush2.bf16.msra.mxu0 %v1043
  %1350 = vmatprep.subr.bf16.mxu0 0
  %1351 = vmatpush2.bf16.msra.mxu0 %v1042
  %1352 = vmatprep.subr.bf16.mxu0 0
  %1353 = vmatpush2.bf16.msra.mxu0 %v1041
  %1354 = vmatprep.subr.bf16.mxu0 0
  %1355 = vmatpush2.bf16.msra.mxu0 %v1040
  %1356 = vmatprep.mubr.bf16.mxu0 %v615
  %1357 = vmatmul.mubr.bf16.gmra.mxu0 %v614
  %v1358 = vpop.f32.mrf.mxu0
  %v1359 = vadd.f32 %v1198, %v1358
  %v1360 = vpop.f32.mrf.mxu0
  %v1361 = vpop.f32.mrf.mxu0
  %v1362 = vadd.f32 %v1201, %v1361
  %v1363 = vpop.f32.mrf.mxu0
  %1364 = vmatprep.mubr.bf16.mxu0 %v622
  %1365 = vmatmul.mubr.bf16.gmra.mxu0 %v621
  %v1366 = vpop.f32.mrf.mxu0
  %v1367 = vadd.f32 %v1206, %v1366
  %v1368 = vpop.f32.mrf.mxu0
  %v1369 = vpop.f32.mrf.mxu0
  %v1370 = vadd.f32 %v1209, %v1369
  %v1371 = vpop.f32.mrf.mxu0
  %1372 = vmatprep.mubr.bf16.mxu0 %v629
  %1373 = vmatmul.mubr.bf16.gmra.mxu0 %v628
  %v1374 = vpop.f32.mrf.mxu0
  %v1375 = vadd.f32 %v1214, %v1374
  %v1376 = vpop.f32.mrf.mxu0
  %v1377 = vpop.f32.mrf.mxu0
  %v1378 = vadd.f32 %v1217, %v1377
  %v1379 = vpop.f32.mrf.mxu0
  %1380 = vmatprep.mubr.bf16.mxu0 %v636
  %1381 = vmatmul.mubr.bf16.gmra.mxu0 %v635
  %v1382 = vpop.f32.mrf.mxu0
  %v1383 = vadd.f32 %v1222, %v1382
  %v1384 = vpop.f32.mrf.mxu0
  %v1385 = vpop.f32.mrf.mxu0
  %v1386 = vadd.f32 %v1225, %v1385
  %v1387 = vpop.f32.mrf.mxu0
  %1388 = vmatprep.mubr.bf16.mxu0 %v643
  %1389 = vmatmul.mubr.bf16.gmra.mxu0 %v642
  %v1390 = vpop.f32.mrf.mxu0
  %v1391 = vadd.f32 %v1230, %v1390
  %v1392 = vpop.f32.mrf.mxu0
  %v1393 = vpop.f32.mrf.mxu0
  %v1394 = vadd.f32 %v1233, %v1393
  %v1395 = vpop.f32.mrf.mxu0
  %1396 = vmatprep.mubr.bf16.mxu0 %v650
  %1397 = vmatmul.mubr.bf16.gmra.mxu0 %v649
  %v1398 = vpop.f32.mrf.mxu0
  %v1399 = vadd.f32 %v1238, %v1398
  %v1400 = vpop.f32.mrf.mxu0
  %v1401 = vpop.f32.mrf.mxu0
  %v1402 = vadd.f32 %v1241, %v1401
  %v1403 = vpop.f32.mrf.mxu0
  %1404 = vmatprep.mubr.bf16.mxu0 %v657
  %1405 = vmatmul.mubr.bf16.gmra.mxu0 %v656
  %v1406 = vpop.f32.mrf.mxu0
  %v1407 = vadd.f32 %v1246, %v1406
  %v1408 = vpop.f32.mrf.mxu0
  %v1409 = vpop.f32.mrf.mxu0
  %v1410 = vadd.f32 %v1249, %v1409
  %v1411 = vpop.f32.mrf.mxu0
  %1412 = vmatprep.mubr.bf16.mxu0 %v664
  %1413 = vmatmul.mubr.bf16.gmra.mxu0 %v663
  %v1414 = vpop.f32.mrf.mxu0
  %v1415 = vadd.f32 %v1254, %v1414
  %v1416 = vpop.f32.mrf.mxu0
  %v1417 = vpop.f32.mrf.mxu0
  %v1418 = vadd.f32 %v1257, %v1417
  %v1419 = vpop.f32.mrf.mxu0
  %1420 = vmatprep.mubr.bf16.mxu0 %v671
  %1421 = vmatmul.mubr.bf16.gmra.mxu0 %v670
  %v1422 = vpop.f32.mrf.mxu0
  %v1423 = vadd.f32 %v1262, %v1422
  %v1424 = vpop.f32.mrf.mxu0
  %v1425 = vpop.f32.mrf.mxu0
  %v1426 = vadd.f32 %v1265, %v1425
  %v1427 = vpop.f32.mrf.mxu0
  %1428 = vmatprep.mubr.bf16.mxu0 %v678
  %1429 = vmatmul.mubr.bf16.gmra.mxu0 %v677
  %v1430 = vpop.f32.mrf.mxu0
  %v1431 = vadd.f32 %v1270, %v1430
  %v1432 = vpop.f32.mrf.mxu0
  %v1433 = vpop.f32.mrf.mxu0
  %v1434 = vadd.f32 %v1273, %v1433
  %v1435 = vpop.f32.mrf.mxu0
  %1436 = vmatprep.mubr.bf16.mxu0 %v685
  %1437 = vmatmul.mubr.bf16.gmra.mxu0 %v684
  %v1438 = vpop.f32.mrf.mxu0
  %v1439 = vadd.f32 %v1278, %v1438
  %v1440 = vpop.f32.mrf.mxu0
  %v1441 = vpop.f32.mrf.mxu0
  %v1442 = vadd.f32 %v1281, %v1441
  %v1443 = vpop.f32.mrf.mxu0
  %1444 = vmatprep.mubr.bf16.mxu0 %v692
  %1445 = vmatmul.mubr.bf16.gmra.mxu0 %v691
  %v1446 = vpop.f32.mrf.mxu0
  %v1447 = vadd.f32 %v1286, %v1446
  %v1448 = vpop.f32.mrf.mxu0
  %v1449 = vpop.f32.mrf.mxu0
  %v1450 = vadd.f32 %v1289, %v1449
  %v1451 = vpop.f32.mrf.mxu0
  %1452 = vmatprep.mubr.bf16.mxu0 %v699
  %1453 = vmatmul.mubr.bf16.gmra.mxu0 %v698
  %v1454 = vpop.f32.mrf.mxu0
  %v1455 = vadd.f32 %v1294, %v1454
  %v1456 = vpop.f32.mrf.mxu0
  %v1457 = vpop.f32.mrf.mxu0
  %v1458 = vadd.f32 %v1297, %v1457
  %v1459 = vpop.f32.mrf.mxu0
  %1460 = vmatprep.mubr.bf16.mxu0 %v706
  %1461 = vmatmul.mubr.bf16.gmra.mxu0 %v705
  %v1462 = vpop.f32.mrf.mxu0
  %v1463 = vadd.f32 %v1302, %v1462
  %v1464 = vpop.f32.mrf.mxu0
  %v1465 = vpop.f32.mrf.mxu0
  %v1466 = vadd.f32 %v1305, %v1465
  %v1467 = vpop.f32.mrf.mxu0
  %1468 = vmatprep.mubr.bf16.mxu0 %v713
  %1469 = vmatmul.mubr.bf16.gmra.mxu0 %v712
  %v1470 = vpop.f32.mrf.mxu0
  %v1471 = vadd.f32 %v1310, %v1470
  %v1472 = vpop.f32.mrf.mxu0
  %v1473 = vpop.f32.mrf.mxu0
  %v1474 = vadd.f32 %v1313, %v1473
  %v1475 = vpop.f32.mrf.mxu0
  %1476 = vmatprep.mubr.bf16.mxu0 %v720
  %1477 = vmatmul.mubr.bf16.gmra.mxu0 %v719
  %v1478 = vpop.f32.mrf.mxu0
  %v1479 = vadd.f32 %v1318, %v1478
  %v1480 = vpop.f32.mrf.mxu0
  %v1481 = vpop.f32.mrf.mxu0
  %v1482 = vadd.f32 %v1321, %v1481
  %v1483 = vpop.f32.mrf.mxu0
  %1484 = vdwg.mxu0
  %1485 = vmatprep.subr.bf16.mxu0 0
  %1486 = vmatpush1.bf16.msra.mxu0 %v1055
  %1487 = vmatprep.subr.bf16.mxu0 0
  %1488 = vmatpush1.bf16.msra.mxu0 %v1054
  %1489 = vmatprep.subr.bf16.mxu0 0
  %1490 = vmatpush1.bf16.msra.mxu0 %v1053
  %1491 = vmatprep.subr.bf16.mxu0 0
  %1492 = vmatpush1.bf16.msra.mxu0 %v1052
  %1493 = vmatprep.subr.bf16.mxu0 0
  %1494 = vmatpush1.bf16.msra.mxu0 %v1051
  %1495 = vmatprep.subr.bf16.mxu0 0
  %1496 = vmatpush1.bf16.msra.mxu0 %v1050
  %1497 = vmatprep.subr.bf16.mxu0 0
  %1498 = vmatpush1.bf16.msra.mxu0 %v1049
  %1499 = vmatprep.subr.bf16.mxu0 0
  %1500 = vmatpush1.bf16.msra.mxu0 %v1048
  %1501 = vmatprep.subr.bf16.mxu0 0
  %1502 = vmatpush2.bf16.msra.mxu0 %v1063
  %1503 = vmatprep.subr.bf16.mxu0 0
  %1504 = vmatpush2.bf16.msra.mxu0 %v1062
  %1505 = vmatprep.subr.bf16.mxu0 0
  %1506 = vmatpush2.bf16.msra.mxu0 %v1061
  %1507 = vmatprep.subr.bf16.mxu0 0
  %1508 = vmatpush2.bf16.msra.mxu0 %v1060
  %1509 = vmatprep.subr.bf16.mxu0 0
  %1510 = vmatpush2.bf16.msra.mxu0 %v1059
  %1511 = vmatprep.subr.bf16.mxu0 0
  %1512 = vmatpush2.bf16.msra.mxu0 %v1058
  %1513 = vmatprep.subr.bf16.mxu0 0
  %1514 = vmatpush2.bf16.msra.mxu0 %v1057
  %1515 = vmatprep.subr.bf16.mxu0 0
  %1516 = vmatpush2.bf16.msra.mxu0 %v1056
  %1517 = vmatprep.mubr.bf16.mxu0 %v617
  %1518 = vmatmul.mubr.bf16.gmra.mxu0 %v616
  %v1519 = vpop.f32.mrf.mxu0
  %v1520 = vadd.f32 %v1359, %v1519
  %v1521 = vpop.f32.mrf.mxu0
  %v1522 = vpop.f32.mrf.mxu0
  %v1523 = vadd.f32 %v1362, %v1522
  %v1524 = vpop.f32.mrf.mxu0
  %1525 = vmatprep.mubr.bf16.mxu0 %v624
  %1526 = vmatmul.mubr.bf16.gmra.mxu0 %v623
  %v1527 = vpop.f32.mrf.mxu0
  %v1528 = vadd.f32 %v1367, %v1527
  %v1529 = vpop.f32.mrf.mxu0
  %v1530 = vpop.f32.mrf.mxu0
  %v1531 = vadd.f32 %v1370, %v1530
  %v1532 = vpop.f32.mrf.mxu0
  %1533 = vmatprep.mubr.bf16.mxu0 %v631
  %1534 = vmatmul.mubr.bf16.gmra.mxu0 %v630
  %v1535 = vpop.f32.mrf.mxu0
  %v1536 = vadd.f32 %v1375, %v1535
  %v1537 = vpop.f32.mrf.mxu0
  %v1538 = vpop.f32.mrf.mxu0
  %v1539 = vadd.f32 %v1378, %v1538
  %v1540 = vpop.f32.mrf.mxu0
  %1541 = vmatprep.mubr.bf16.mxu0 %v638
  %1542 = vmatmul.mubr.bf16.gmra.mxu0 %v637
  %v1543 = vpop.f32.mrf.mxu0
  %v1544 = vadd.f32 %v1383, %v1543
  %v1545 = vpop.f32.mrf.mxu0
  %v1546 = vpop.f32.mrf.mxu0
  %v1547 = vadd.f32 %v1386, %v1546
  %v1548 = vpop.f32.mrf.mxu0
  %1549 = vmatprep.mubr.bf16.mxu0 %v645
  %1550 = vmatmul.mubr.bf16.gmra.mxu0 %v644
  %v1551 = vpop.f32.mrf.mxu0
  %v1552 = vadd.f32 %v1391, %v1551
  %v1553 = vpop.f32.mrf.mxu0
  %v1554 = vpop.f32.mrf.mxu0
  %v1555 = vadd.f32 %v1394, %v1554
  %v1556 = vpop.f32.mrf.mxu0
  %1557 = vmatprep.mubr.bf16.mxu0 %v652
  %1558 = vmatmul.mubr.bf16.gmra.mxu0 %v651
  %v1559 = vpop.f32.mrf.mxu0
  %v1560 = vadd.f32 %v1399, %v1559
  %v1561 = vpop.f32.mrf.mxu0
  %v1562 = vpop.f32.mrf.mxu0
  %v1563 = vadd.f32 %v1402, %v1562
  %v1564 = vpop.f32.mrf.mxu0
  %1565 = vmatprep.mubr.bf16.mxu0 %v659
  %1566 = vmatmul.mubr.bf16.gmra.mxu0 %v658
  %v1567 = vpop.f32.mrf.mxu0
  %v1568 = vadd.f32 %v1407, %v1567
  %v1569 = vpop.f32.mrf.mxu0
  %v1570 = vpop.f32.mrf.mxu0
  %v1571 = vadd.f32 %v1410, %v1570
  %v1572 = vpop.f32.mrf.mxu0
  %1573 = vmatprep.mubr.bf16.mxu0 %v666
  %1574 = vmatmul.mubr.bf16.gmra.mxu0 %v665
  %v1575 = vpop.f32.mrf.mxu0
  %v1576 = vadd.f32 %v1415, %v1575
  %v1577 = vpop.f32.mrf.mxu0
  %v1578 = vpop.f32.mrf.mxu0
  %v1579 = vadd.f32 %v1418, %v1578
  %v1580 = vpop.f32.mrf.mxu0
  %1581 = vmatprep.mubr.bf16.mxu0 %v673
  %1582 = vmatmul.mubr.bf16.gmra.mxu0 %v672
  %v1583 = vpop.f32.mrf.mxu0
  %v1584 = vadd.f32 %v1423, %v1583
  %v1585 = vpop.f32.mrf.mxu0
  %v1586 = vpop.f32.mrf.mxu0
  %v1587 = vadd.f32 %v1426, %v1586
  %v1588 = vpop.f32.mrf.mxu0
  %1589 = vmatprep.mubr.bf16.mxu0 %v680
  %1590 = vmatmul.mubr.bf16.gmra.mxu0 %v679
  %v1591 = vpop.f32.mrf.mxu0
  %v1592 = vadd.f32 %v1431, %v1591
  %v1593 = vpop.f32.mrf.mxu0
  %v1594 = vpop.f32.mrf.mxu0
  %v1595 = vadd.f32 %v1434, %v1594
  %v1596 = vpop.f32.mrf.mxu0
  %1597 = vmatprep.mubr.bf16.mxu0 %v687
  %1598 = vmatmul.mubr.bf16.gmra.mxu0 %v686
  %v1599 = vpop.f32.mrf.mxu0
  %v1600 = vadd.f32 %v1439, %v1599
  %v1601 = vpop.f32.mrf.mxu0
  %v1602 = vpop.f32.mrf.mxu0
  %v1603 = vadd.f32 %v1442, %v1602
  %v1604 = vpop.f32.mrf.mxu0
  %1605 = vmatprep.mubr.bf16.mxu0 %v694
  %1606 = vmatmul.mubr.bf16.gmra.mxu0 %v693
  %v1607 = vpop.f32.mrf.mxu0
  %v1608 = vadd.f32 %v1447, %v1607
  %v1609 = vpop.f32.mrf.mxu0
  %v1610 = vpop.f32.mrf.mxu0
  %v1611 = vadd.f32 %v1450, %v1610
  %v1612 = vpop.f32.mrf.mxu0
  %1613 = vmatprep.mubr.bf16.mxu0 %v701
  %1614 = vmatmul.mubr.bf16.gmra.mxu0 %v700
  %v1615 = vpop.f32.mrf.mxu0
  %v1616 = vadd.f32 %v1455, %v1615
  %v1617 = vpop.f32.mrf.mxu0
  %v1618 = vpop.f32.mrf.mxu0
  %v1619 = vadd.f32 %v1458, %v1618
  %v1620 = vpop.f32.mrf.mxu0
  %1621 = vmatprep.mubr.bf16.mxu0 %v708
  %1622 = vmatmul.mubr.bf16.gmra.mxu0 %v707
  %v1623 = vpop.f32.mrf.mxu0
  %v1624 = vadd.f32 %v1463, %v1623
  %v1625 = vpop.f32.mrf.mxu0
  %v1626 = vpop.f32.mrf.mxu0
  %v1627 = vadd.f32 %v1466, %v1626
  %v1628 = vpop.f32.mrf.mxu0
  %1629 = vmatprep.mubr.bf16.mxu0 %v715
  %1630 = vmatmul.mubr.bf16.gmra.mxu0 %v714
  %v1631 = vpop.f32.mrf.mxu0
  %v1632 = vadd.f32 %v1471, %v1631
  %v1633 = vpop.f32.mrf.mxu0
  %v1634 = vpop.f32.mrf.mxu0
  %v1635 = vadd.f32 %v1474, %v1634
  %v1636 = vpop.f32.mrf.mxu0
  %1637 = vmatprep.mubr.bf16.mxu0 %v722
  %1638 = vmatmul.mubr.bf16.gmra.mxu0 %v721
  %v1639 = vpop.f32.mrf.mxu0
  %v1640 = vadd.f32 %v1479, %v1639
  %v1641 = vpop.f32.mrf.mxu0
  %v1642 = vpop.f32.mrf.mxu0
  %v1643 = vadd.f32 %v1482, %v1642
  %v1644 = vpop.f32.mrf.mxu0
  %1645 = vdwg.mxu0
  %1646 = vmatprep.subr.bf16.mxu0 0
  %1647 = vmatpush1.bf16.msra.mxu0 0
  %1648 = vmatprep.subr.bf16.mxu0 0
  %1649 = vmatpush1.bf16.msra.mxu0 0
  %1650 = vmatprep.subr.bf16.mxu0 0
  %1651 = vmatpush1.bf16.msra.mxu0 0
  %1652 = vmatprep.subr.bf16.mxu0 0
  %1653 = vmatpush1.bf16.msra.mxu0 0
  %1654 = vmatprep.subr.bf16.mxu0 0
  %1655 = vmatpush1.bf16.msra.mxu0 0
  %1656 = vmatprep.subr.bf16.mxu0 0
  %1657 = vmatpush1.bf16.msra.mxu0 0
  %1658 = vmatprep.subr.bf16.mxu0 0
  %1659 = vmatpush1.bf16.msra.mxu0 0
  %1660 = vmatprep.subr.bf16.mxu0 0
  %1661 = vmatpush1.bf16.msra.mxu0 %v1064
  %1662 = vmatprep.subr.bf16.mxu0 0
  %1663 = vmatpush2.bf16.msra.mxu0 0
  %1664 = vmatprep.subr.bf16.mxu0 0
  %1665 = vmatpush2.bf16.msra.mxu0 0
  %1666 = vmatprep.subr.bf16.mxu0 0
  %1667 = vmatpush2.bf16.msra.mxu0 0
  %1668 = vmatprep.subr.bf16.mxu0 0
  %1669 = vmatpush2.bf16.msra.mxu0 0
  %1670 = vmatprep.subr.bf16.mxu0 0
  %1671 = vmatpush2.bf16.msra.mxu0 0
  %1672 = vmatprep.subr.bf16.mxu0 0
  %1673 = vmatpush2.bf16.msra.mxu0 0
  %1674 = vmatprep.subr.bf16.mxu0 0
  %1675 = vmatpush2.bf16.msra.mxu0 0
  %1676 = vmatprep.subr.bf16.mxu0 0
  %1677 = vmatpush2.bf16.msra.mxu0 0
  %1678 = vmatprep.mubr.bf16.mxu0 0
  %1679 = vmatmul.mubr.bf16.gmra.mxu0 %v1116
  %v1680 = vpop.f32.mrf.mxu0
  %v1681 = vadd.f32 %v1520, %v1680
  %v1682 = vpop.f32.mrf.mxu0
  %v1683 = vpop.f32.mrf.mxu0
  %v1684 = vadd.f32 %v1523, %v1683
  %v1685 = vpop.f32.mrf.mxu0
  %1686 = vmatprep.mubr.bf16.mxu0 0
  %1687 = vmatmul.mubr.bf16.gmra.mxu0 %v1119
  %v1688 = vpop.f32.mrf.mxu0
  %v1689 = vadd.f32 %v1528, %v1688
  %v1690 = vpop.f32.mrf.mxu0
  %v1691 = vpop.f32.mrf.mxu0
  %v1692 = vadd.f32 %v1531, %v1691
  %v1693 = vpop.f32.mrf.mxu0
  %1694 = vmatprep.mubr.bf16.mxu0 0
  %1695 = vmatmul.mubr.bf16.gmra.mxu0 %v1122
  %v1696 = vpop.f32.mrf.mxu0
  %v1697 = vadd.f32 %v1536, %v1696
  %v1698 = vpop.f32.mrf.mxu0
  %v1699 = vpop.f32.mrf.mxu0
  %v1700 = vadd.f32 %v1539, %v1699
  %v1701 = vpop.f32.mrf.mxu0
  %1702 = vmatprep.mubr.bf16.mxu0 0
  %1703 = vmatmul.mubr.bf16.gmra.mxu0 %v1125
  %v1704 = vpop.f32.mrf.mxu0
  %v1705 = vadd.f32 %v1544, %v1704
  %v1706 = vpop.f32.mrf.mxu0
  %v1707 = vpop.f32.mrf.mxu0
  %v1708 = vadd.f32 %v1547, %v1707
  %v1709 = vpop.f32.mrf.mxu0
  %1710 = vmatprep.mubr.bf16.mxu0 0
  %1711 = vmatmul.mubr.bf16.gmra.mxu0 %v1128
  %v1712 = vpop.f32.mrf.mxu0
  %v1713 = vadd.f32 %v1552, %v1712
  %v1714 = vpop.f32.mrf.mxu0
  %v1715 = vpop.f32.mrf.mxu0
  %v1716 = vadd.f32 %v1555, %v1715
  %v1717 = vpop.f32.mrf.mxu0
  %1718 = vmatprep.mubr.bf16.mxu0 0
  %1719 = vmatmul.mubr.bf16.gmra.mxu0 %v1131
  %v1720 = vpop.f32.mrf.mxu0
  %v1721 = vadd.f32 %v1560, %v1720
  %v1722 = vpop.f32.mrf.mxu0
  %v1723 = vpop.f32.mrf.mxu0
  %v1724 = vadd.f32 %v1563, %v1723
  %v1725 = vpop.f32.mrf.mxu0
  %1726 = vmatprep.mubr.bf16.mxu0 0
  %1727 = vmatmul.mubr.bf16.gmra.mxu0 %v1134
  %v1728 = vpop.f32.mrf.mxu0
  %v1729 = vadd.f32 %v1568, %v1728
  %v1730 = vpop.f32.mrf.mxu0
  %v1731 = vpop.f32.mrf.mxu0
  %v1732 = vadd.f32 %v1571, %v1731
  %v1733 = vpop.f32.mrf.mxu0
  %1734 = vmatprep.mubr.bf16.mxu0 0
  %1735 = vmatmul.mubr.bf16.gmra.mxu0 %v1137
  %v1736 = vpop.f32.mrf.mxu0
  %v1737 = vadd.f32 %v1576, %v1736
  %v1738 = vpop.f32.mrf.mxu0
  %v1739 = vpop.f32.mrf.mxu0
  %v1740 = vadd.f32 %v1579, %v1739
  %v1741 = vpop.f32.mrf.mxu0
  %1742 = vmatprep.mubr.bf16.mxu0 0
  %1743 = vmatmul.mubr.bf16.gmra.mxu0 %v1140
  %v1744 = vpop.f32.mrf.mxu0
  %v1745 = vadd.f32 %v1584, %v1744
  %v1746 = vpop.f32.mrf.mxu0
  %v1747 = vpop.f32.mrf.mxu0
  %v1748 = vadd.f32 %v1587, %v1747
  %v1749 = vpop.f32.mrf.mxu0
  %1750 = vmatprep.mubr.bf16.mxu0 0
  %1751 = vmatmul.mubr.bf16.gmra.mxu0 %v1143
  %v1752 = vpop.f32.mrf.mxu0
  %v1753 = vadd.f32 %v1592, %v1752
  %v1754 = vpop.f32.mrf.mxu0
  %v1755 = vpop.f32.mrf.mxu0
  %v1756 = vadd.f32 %v1595, %v1755
  %v1757 = vpop.f32.mrf.mxu0
  %1758 = vmatprep.mubr.bf16.mxu0 0
  %1759 = vmatmul.mubr.bf16.gmra.mxu0 %v1146
  %v1760 = vpop.f32.mrf.mxu0
  %v1761 = vadd.f32 %v1600, %v1760
  %v1762 = vpop.f32.mrf.mxu0
  %v1763 = vpop.f32.mrf.mxu0
  %v1764 = vadd.f32 %v1603, %v1763
  %v1765 = vpop.f32.mrf.mxu0
  %1766 = vmatprep.mubr.bf16.mxu0 0
  %1767 = vmatmul.mubr.bf16.gmra.mxu0 %v1149
  %v1768 = vpop.f32.mrf.mxu0
  %v1769 = vadd.f32 %v1608, %v1768
  %v1770 = vpop.f32.mrf.mxu0
  %v1771 = vpop.f32.mrf.mxu0
  %v1772 = vadd.f32 %v1611, %v1771
  %v1773 = vpop.f32.mrf.mxu0
  %1774 = vmatprep.mubr.bf16.mxu0 0
  %1775 = vmatmul.mubr.bf16.gmra.mxu0 %v1152
  %v1776 = vpop.f32.mrf.mxu0
  %v1777 = vadd.f32 %v1616, %v1776
  %v1778 = vpop.f32.mrf.mxu0
  %v1779 = vpop.f32.mrf.mxu0
  %v1780 = vadd.f32 %v1619, %v1779
  %v1781 = vpop.f32.mrf.mxu0
  %1782 = vmatprep.mubr.bf16.mxu0 0
  %1783 = vmatmul.mubr.bf16.gmra.mxu0 %v1155
  %v1784 = vpop.f32.mrf.mxu0
  %v1785 = vadd.f32 %v1624, %v1784
  %v1786 = vpop.f32.mrf.mxu0
  %v1787 = vpop.f32.mrf.mxu0
  %v1788 = vadd.f32 %v1627, %v1787
  %v1789 = vpop.f32.mrf.mxu0
  %1790 = vmatprep.mubr.bf16.mxu0 0
  %1791 = vmatmul.mubr.bf16.gmra.mxu0 %v1158
  %v1792 = vpop.f32.mrf.mxu0
  %v1793 = vadd.f32 %v1632, %v1792
  %v1794 = vpop.f32.mrf.mxu0
  %v1795 = vpop.f32.mrf.mxu0
  %v1796 = vadd.f32 %v1635, %v1795
  %v1797 = vpop.f32.mrf.mxu0
  %1798 = vmatprep.mubr.bf16.mxu0 0
  %1799 = vmatmul.mubr.bf16.gmra.mxu0 %v1161
  %v1800 = vpop.f32.mrf.mxu0
  %v1801 = vadd.f32 %v1640, %v1800
  %v1802 = vpop.f32.mrf.mxu0
  %v1803 = vpop.f32.mrf.mxu0
  %v1804 = vadd.f32 %v1643, %v1803
  %v1805 = vpop.f32.mrf.mxu0
  %1806 = vdwg.mxu0
  %v1807 = vmax.f32 %v1681, 0.0
  %v1808 = vmax.f32 %v1684, 0.0
  %v1809 = vmax.f32 %v1689, 0.0
  %v1810 = vmax.f32 %v1692, 0.0
  %v1811 = vmax.f32 %v1697, 0.0
  %v1812 = vmax.f32 %v1700, 0.0
  %v1813 = vmax.f32 %v1705, 0.0
  %v1814 = vmax.f32 %v1708, 0.0
  %v1815 = vmax.f32 %v1713, 0.0
  %v1816 = vmax.f32 %v1716, 0.0
  %v1817 = vmax.f32 %v1721, 0.0
  %v1818 = vmax.f32 %v1724, 0.0
  %v1819 = vmax.f32 %v1729, 0.0
  %v1820 = vmax.f32 %v1732, 0.0
  %v1821 = vmax.f32 %v1737, 0.0
  %v1822 = vmax.f32 %v1740, 0.0
  %v1823 = vmax.f32 %v1745, 0.0
  %v1824 = vmax.f32 %v1748, 0.0
  %v1825 = vmax.f32 %v1753, 0.0
  %v1826 = vmax.f32 %v1756, 0.0
  %v1827 = vmax.f32 %v1761, 0.0
  %v1828 = vmax.f32 %v1764, 0.0
  %v1829 = vmax.f32 %v1769, 0.0
  %v1830 = vmax.f32 %v1772, 0.0
  %v1831 = vmax.f32 %v1777, 0.0
  %v1832 = vmax.f32 %v1780, 0.0
  %v1833 = vmax.f32 %v1785, 0.0
  %v1834 = vmax.f32 %v1788, 0.0
  %v1835 = vmax.f32 %v1793, 0.0
  %v1836 = vmax.f32 %v1796, 0.0
  %v1837 = vmax.f32 %v1801, 0.0
  %v1838 = vmax.f32 %v1804, 0.0
  %v1839 = vpack.c.bf16 %v1808, %v1807
  %v1840 = vpack.c.bf16 %v1810, %v1809
  %v1841 = vpack.c.bf16 %v1812, %v1811
  %v1842 = vpack.c.bf16 %v1814, %v1813
  %v1843 = vpack.c.bf16 %v1816, %v1815
  %v1844 = vpack.c.bf16 %v1818, %v1817
  %v1845 = vpack.c.bf16 %v1820, %v1819
  %v1846 = vpack.c.bf16 %v1822, %v1821
  %v1847 = vpack.c.bf16 %v1824, %v1823
  %v1848 = vpack.c.bf16 %v1826, %v1825
  %v1849 = vpack.c.bf16 %v1828, %v1827
  %v1850 = vpack.c.bf16 %v1830, %v1829
  %v1851 = vpack.c.bf16 %v1832, %v1831
  %v1852 = vpack.c.bf16 %v1834, %v1833
  %v1853 = vpack.c.bf16 %v1836, %v1835
  %v1854 = vpack.c.bf16 %v1838, %v1837
  %v1855 = vld [vmem:[%s3] sm:$0xf]
  %v1856 = vld [vmem:[%s3 + $0x4] sm:$0xf]
  %v1857 = vld [vmem:[%s3 + $0x8] sm:$0xf]
  %v1858 = vld [vmem:[%s3 + $0xc] sm:$0xf]
  %v1859 = vld [vmem:[%s3 + $0x10] sm:$0xf]
  %v1860 = vld [vmem:[%s3 + $0x14] sm:$0xf]
  %v1861 = vld [vmem:[%s3 + $0x18] sm:$0xf]
  %v1862 = vld [vmem:[%s3 + $0x1c] sm:$0xf]
  %v1863 = vld [vmem:[%s3 + $0x20] sm:$0xf]
  %v1864 = vld [vmem:[%s3 + $0x24] sm:$0xf]
  %v1865 = vld [vmem:[%s3 + $0x28] sm:$0xf]
  %v1866 = vld [vmem:[%s3 + $0x2c] sm:$0xf]
  %v1867 = vld [vmem:[%s3 + $0x30] sm:$0xf]
  %v1868 = vld [vmem:[%s3 + $0x34] sm:$0xf]
  %v1869 = vld [vmem:[%s3 + $0x38] sm:$0xf]
  %v1870 = vld [vmem:[%s3 + $0x3c] sm:$0xf]
  %v1871 = vld [vmem:[%s4] sm:$0x1]
  %v1873 = vlaneseq
  %v1874 = vshrl.u32 %v1873, 7
  %v1875 = vsub.s32 0, %v1874
  %v1876 = vrot.slane %v1871, %v1875
  %v1894 = vunpack.c.l.b16 %v1855
  %v1895 = vunpack.c.l.b16 %v1856
  %v1896 = vunpack.c.l.b16 %v1857
  %v1897 = vunpack.c.l.b16 %v1858
  %v1898 = vunpack.c.l.b16 %v1859
  %v1899 = vunpack.c.l.b16 %v1860
  %v1900 = vunpack.c.l.b16 %v1861
  %v1901 = vunpack.c.l.b16 %v1862
  %v1902 = vunpack.c.l.b16 %v1863
  %v1903 = vunpack.c.l.b16 %v1864
  %v1904 = vunpack.c.l.b16 %v1865
  %v1905 = vunpack.c.l.b16 %v1866
  %v1906 = vunpack.c.l.b16 %v1867
  %v1907 = vunpack.c.l.b16 %v1868
  %v1908 = vunpack.c.l.b16 %v1869
  %v1909 = vunpack.c.l.b16 %v1870
  %v1910 = vpack.c.b16 %v1895, %v1894
  %v1911 = vpack.c.b16 %v1897, %v1896
  %v1912 = vpack.c.b16 %v1899, %v1898
  %v1913 = vpack.c.b16 %v1901, %v1900
  %v1914 = vpack.c.b16 %v1903, %v1902
  %v1915 = vpack.c.b16 %v1905, %v1904
  %v1916 = vpack.c.b16 %v1907, %v1906
  %v1917 = vpack.c.b16 %v1909, %v1908
  %1926 = vmatprep.subr.bf16.mxu0 0
  %1927 = vmatpush1.bf16.msra.mxu0 %v1917
  %1928 = vmatprep.subr.bf16.mxu0 0
  %1929 = vmatpush1.bf16.msra.mxu0 %v1916
  %1930 = vmatprep.subr.bf16.mxu0 0
  %1931 = vmatpush1.bf16.msra.mxu0 %v1915
  %1932 = vmatprep.subr.bf16.mxu0 0
  %1933 = vmatpush1.bf16.msra.mxu0 %v1914
  %1934 = vmatprep.subr.bf16.mxu0 0
  %1935 = vmatpush1.bf16.msra.mxu0 %v1913
  %1936 = vmatprep.subr.bf16.mxu0 0
  %1937 = vmatpush1.bf16.msra.mxu0 %v1912
  %1938 = vmatprep.subr.bf16.mxu0 0
  %1939 = vmatpush1.bf16.msra.mxu0 %v1911
  %1940 = vmatprep.subr.bf16.mxu0 0
  %1941 = vmatpush1.bf16.msra.mxu0 %v1910
  %1942 = vmatprep.subr.bf16.mxu0 0
  %1943 = vmatpush2.bf16.msra.mxu0 0
  %1944 = vmatprep.subr.bf16.mxu0 0
  %1945 = vmatpush2.bf16.msra.mxu0 0
  %1946 = vmatprep.subr.bf16.mxu0 0
  %1947 = vmatpush2.bf16.msra.mxu0 0
  %1948 = vmatprep.subr.bf16.mxu0 0
  %1949 = vmatpush2.bf16.msra.mxu0 0
  %1950 = vmatprep.subr.bf16.mxu0 0
  %1951 = vmatpush2.bf16.msra.mxu0 0
  %1952 = vmatprep.subr.bf16.mxu0 0
  %1953 = vmatpush2.bf16.msra.mxu0 0
  %1954 = vmatprep.subr.bf16.mxu0 0
  %1955 = vmatpush2.bf16.msra.mxu0 0
  %1956 = vmatprep.subr.bf16.mxu0 0
  %1957 = vmatpush2.bf16.msra.mxu0 0
  %1958 = vmatprep.mubr.bf16.mxu0 0
  %1959 = vmatmul.mubr.bf16.gmra.mxu0 %v1839
  %v1960 = vpop.f32.mrf.mxu0
  %v1961 = vadd.f32 %v1876, %v1960
  %v1962 = vpop.f32.mrf.mxu0
  %v1963 = vpop.f32.mrf.mxu0
  %v1964 = vadd.f32 %v1876, %v1963
  %v1965 = vpop.f32.mrf.mxu0
  %1966 = vmatprep.mubr.bf16.mxu0 0
  %1967 = vmatmul.mubr.bf16.gmra.mxu0 %v1840
  %v1968 = vpop.f32.mrf.mxu0
  %v1969 = vadd.f32 %v1876, %v1968
  %v1970 = vpop.f32.mrf.mxu0
  %v1971 = vpop.f32.mrf.mxu0
  %v1972 = vadd.f32 %v1876, %v1971
  %v1973 = vpop.f32.mrf.mxu0
  %1974 = vmatprep.mubr.bf16.mxu0 0
  %1975 = vmatmul.mubr.bf16.gmra.mxu0 %v1841
  %v1976 = vpop.f32.mrf.mxu0
  %v1977 = vadd.f32 %v1876, %v1976
  %v1978 = vpop.f32.mrf.mxu0
  %v1979 = vpop.f32.mrf.mxu0
  %v1980 = vadd.f32 %v1876, %v1979
  %v1981 = vpop.f32.mrf.mxu0
  %1982 = vmatprep.mubr.bf16.mxu0 0
  %1983 = vmatmul.mubr.bf16.gmra.mxu0 %v1842
  %v1984 = vpop.f32.mrf.mxu0
  %v1985 = vadd.f32 %v1876, %v1984
  %v1986 = vpop.f32.mrf.mxu0
  %v1987 = vpop.f32.mrf.mxu0
  %v1988 = vadd.f32 %v1876, %v1987
  %v1989 = vpop.f32.mrf.mxu0
  %1990 = vmatprep.mubr.bf16.mxu0 0
  %1991 = vmatmul.mubr.bf16.gmra.mxu0 %v1843
  %v1992 = vpop.f32.mrf.mxu0
  %v1993 = vadd.f32 %v1876, %v1992
  %v1994 = vpop.f32.mrf.mxu0
  %v1995 = vpop.f32.mrf.mxu0
  %v1996 = vadd.f32 %v1876, %v1995
  %v1997 = vpop.f32.mrf.mxu0
  %1998 = vmatprep.mubr.bf16.mxu0 0
  %1999 = vmatmul.mubr.bf16.gmra.mxu0 %v1844
  %v2000 = vpop.f32.mrf.mxu0
  %v2001 = vadd.f32 %v1876, %v2000
  %v2002 = vpop.f32.mrf.mxu0
  %v2003 = vpop.f32.mrf.mxu0
  %v2004 = vadd.f32 %v1876, %v2003
  %v2005 = vpop.f32.mrf.mxu0
  %2006 = vmatprep.mubr.bf16.mxu0 0
  %2007 = vmatmul.mubr.bf16.gmra.mxu0 %v1845
  %v2008 = vpop.f32.mrf.mxu0
  %v2009 = vadd.f32 %v1876, %v2008
  %v2010 = vpop.f32.mrf.mxu0
  %v2011 = vpop.f32.mrf.mxu0
  %v2012 = vadd.f32 %v1876, %v2011
  %v2013 = vpop.f32.mrf.mxu0
  %2014 = vmatprep.mubr.bf16.mxu0 0
  %2015 = vmatmul.mubr.bf16.gmra.mxu0 %v1846
  %v2016 = vpop.f32.mrf.mxu0
  %v2017 = vadd.f32 %v1876, %v2016
  %v2018 = vpop.f32.mrf.mxu0
  %v2019 = vpop.f32.mrf.mxu0
  %v2020 = vadd.f32 %v1876, %v2019
  %v2021 = vpop.f32.mrf.mxu0
  %2022 = vmatprep.mubr.bf16.mxu0 0
  %2023 = vmatmul.mubr.bf16.gmra.mxu0 %v1847
  %v2024 = vpop.f32.mrf.mxu0
  %v2025 = vadd.f32 %v1876, %v2024
  %v2026 = vpop.f32.mrf.mxu0
  %v2027 = vpop.f32.mrf.mxu0
  %v2028 = vadd.f32 %v1876, %v2027
  %v2029 = vpop.f32.mrf.mxu0
  %2030 = vmatprep.mubr.bf16.mxu0 0
  %2031 = vmatmul.mubr.bf16.gmra.mxu0 %v1848
  %v2032 = vpop.f32.mrf.mxu0
  %v2033 = vadd.f32 %v1876, %v2032
  %v2034 = vpop.f32.mrf.mxu0
  %v2035 = vpop.f32.mrf.mxu0
  %v2036 = vadd.f32 %v1876, %v2035
  %v2037 = vpop.f32.mrf.mxu0
  %2038 = vmatprep.mubr.bf16.mxu0 0
  %2039 = vmatmul.mubr.bf16.gmra.mxu0 %v1849
  %v2040 = vpop.f32.mrf.mxu0
  %v2041 = vadd.f32 %v1876, %v2040
  %v2042 = vpop.f32.mrf.mxu0
  %v2043 = vpop.f32.mrf.mxu0
  %v2044 = vadd.f32 %v1876, %v2043
  %v2045 = vpop.f32.mrf.mxu0
  %2046 = vmatprep.mubr.bf16.mxu0 0
  %2047 = vmatmul.mubr.bf16.gmra.mxu0 %v1850
  %v2048 = vpop.f32.mrf.mxu0
  %v2049 = vadd.f32 %v1876, %v2048
  %v2050 = vpop.f32.mrf.mxu0
  %v2051 = vpop.f32.mrf.mxu0
  %v2052 = vadd.f32 %v1876, %v2051
  %v2053 = vpop.f32.mrf.mxu0
  %2054 = vmatprep.mubr.bf16.mxu0 0
  %2055 = vmatmul.mubr.bf16.gmra.mxu0 %v1851
  %v2056 = vpop.f32.mrf.mxu0
  %v2057 = vadd.f32 %v1876, %v2056
  %v2058 = vpop.f32.mrf.mxu0
  %v2059 = vpop.f32.mrf.mxu0
  %v2060 = vadd.f32 %v1876, %v2059
  %v2061 = vpop.f32.mrf.mxu0
  %2062 = vmatprep.mubr.bf16.mxu0 0
  %2063 = vmatmul.mubr.bf16.gmra.mxu0 %v1852
  %v2064 = vpop.f32.mrf.mxu0
  %v2065 = vadd.f32 %v1876, %v2064
  %v2066 = vpop.f32.mrf.mxu0
  %v2067 = vpop.f32.mrf.mxu0
  %v2068 = vadd.f32 %v1876, %v2067
  %v2069 = vpop.f32.mrf.mxu0
  %2070 = vmatprep.mubr.bf16.mxu0 0
  %2071 = vmatmul.mubr.bf16.gmra.mxu0 %v1853
  %v2072 = vpop.f32.mrf.mxu0
  %v2073 = vadd.f32 %v1876, %v2072
  %v2074 = vpop.f32.mrf.mxu0
  %v2075 = vpop.f32.mrf.mxu0
  %v2076 = vadd.f32 %v1876, %v2075
  %v2077 = vpop.f32.mrf.mxu0
  %2078 = vmatprep.mubr.bf16.mxu0 0
  %2079 = vmatmul.mubr.bf16.gmra.mxu0 %v1854
  %v2080 = vpop.f32.mrf.mxu0
  %v2081 = vadd.f32 %v1876, %v2080
  %v2082 = vpop.f32.mrf.mxu0
  %v2083 = vpop.f32.mrf.mxu0
  %v2084 = vadd.f32 %v1876, %v2083
  %v2085 = vpop.f32.mrf.mxu0
  %2086 = vdwg.mxu0
  %v2087 = vmax.f32 %v1961, 0.0
  %v2088 = vmax.f32 %v1964, 0.0
  %v2089 = vmax.f32 %v1969, 0.0
  %v2090 = vmax.f32 %v1972, 0.0
  %v2091 = vmax.f32 %v1977, 0.0
  %v2092 = vmax.f32 %v1980, 0.0
  %v2093 = vmax.f32 %v1985, 0.0
  %v2094 = vmax.f32 %v1988, 0.0
  %v2095 = vmax.f32 %v1993, 0.0
  %v2096 = vmax.f32 %v1996, 0.0
  %v2097 = vmax.f32 %v2001, 0.0
  %v2098 = vmax.f32 %v2004, 0.0
  %v2099 = vmax.f32 %v2009, 0.0
  %v2100 = vmax.f32 %v2012, 0.0
  %v2101 = vmax.f32 %v2017, 0.0
  %v2102 = vmax.f32 %v2020, 0.0
  %v2103 = vmax.f32 %v2025, 0.0
  %v2104 = vmax.f32 %v2028, 0.0
  %v2105 = vmax.f32 %v2033, 0.0
  %v2106 = vmax.f32 %v2036, 0.0
  %v2107 = vmax.f32 %v2041, 0.0
  %v2108 = vmax.f32 %v2044, 0.0
  %v2109 = vmax.f32 %v2049, 0.0
  %v2110 = vmax.f32 %v2052, 0.0
  %v2111 = vmax.f32 %v2057, 0.0
  %v2112 = vmax.f32 %v2060, 0.0
  %v2113 = vmax.f32 %v2065, 0.0
  %v2114 = vmax.f32 %v2068, 0.0
  %v2115 = vmax.f32 %v2073, 0.0
  %v2116 = vmax.f32 %v2076, 0.0
  %v2117 = vmax.f32 %v2081, 0.0
  %v2118 = vmax.f32 %v2084, 0.0
  %v2119 = vpack.c.bf16 %v2088, %v2087
  %v2120 = vpack.c.bf16 %v2090, %v2089
  %v2121 = vpack.c.bf16 %v2092, %v2091
  %v2122 = vpack.c.bf16 %v2094, %v2093
  %v2123 = vpack.c.bf16 %v2096, %v2095
  %v2124 = vpack.c.bf16 %v2098, %v2097
  %v2125 = vpack.c.bf16 %v2100, %v2099
  %v2126 = vpack.c.bf16 %v2102, %v2101
  %v2127 = vpack.c.bf16 %v2104, %v2103
  %v2128 = vpack.c.bf16 %v2106, %v2105
  %v2129 = vpack.c.bf16 %v2108, %v2107
  %v2130 = vpack.c.bf16 %v2110, %v2109
  %v2131 = vpack.c.bf16 %v2112, %v2111
  %v2132 = vpack.c.bf16 %v2114, %v2113
  %v2133 = vpack.c.bf16 %v2116, %v2115
  %v2134 = vpack.c.bf16 %v2118, %v2117
  %v2135 = vld [vmem:[%s5] sm:$0xf]
  %v2136 = vld [vmem:[%s5 + $0x4] sm:$0xf]
  %v2137 = vld [vmem:[%s5 + $0x8] sm:$0xf]
  %v2138 = vld [vmem:[%s5 + $0xc] sm:$0xf]
  %v2139 = vld [vmem:[%s5 + $0x10] sm:$0xf]
  %v2140 = vld [vmem:[%s5 + $0x14] sm:$0xf]
  %v2141 = vld [vmem:[%s5 + $0x18] sm:$0xf]
  %v2142 = vld [vmem:[%s5 + $0x1c] sm:$0xf]
  %v2143 = vld [vmem:[%s5 + $0x20] sm:$0xf]
  %v2144 = vld [vmem:[%s5 + $0x24] sm:$0xf]
  %v2145 = vld [vmem:[%s5 + $0x28] sm:$0xf]
  %v2146 = vld [vmem:[%s5 + $0x2c] sm:$0xf]
  %v2147 = vld [vmem:[%s5 + $0x30] sm:$0xf]
  %v2148 = vld [vmem:[%s5 + $0x34] sm:$0xf]
  %v2149 = vld [vmem:[%s5 + $0x38] sm:$0xf]
  %v2150 = vld [vmem:[%s5 + $0x3c] sm:$0xf]
  %v2151 = vld [vmem:[%s6] sm:$0x1]
  %v2153 = vlaneseq
  %v2154 = vshrl.u32 %v2153, 7
  %v2155 = vsub.s32 0, %v2154
  %v2156 = vrot.slane %v2151, %v2155
  %v2174 = vunpack.c.l.b16 %v2135
  %v2175 = vunpack.c.l.b16 %v2136
  %v2176 = vunpack.c.l.b16 %v2137
  %v2177 = vunpack.c.l.b16 %v2138
  %v2178 = vunpack.c.l.b16 %v2139
  %v2179 = vunpack.c.l.b16 %v2140
  %v2180 = vunpack.c.l.b16 %v2141
  %v2181 = vunpack.c.l.b16 %v2142
  %v2182 = vunpack.c.l.b16 %v2143
  %v2183 = vunpack.c.l.b16 %v2144
  %v2184 = vunpack.c.l.b16 %v2145
  %v2185 = vunpack.c.l.b16 %v2146
  %v2186 = vunpack.c.l.b16 %v2147
  %v2187 = vunpack.c.l.b16 %v2148
  %v2188 = vunpack.c.l.b16 %v2149
  %v2189 = vunpack.c.l.b16 %v2150
  %v2190 = vpack.c.b16 %v2175, %v2174
  %v2191 = vpack.c.b16 %v2177, %v2176
  %v2192 = vpack.c.b16 %v2179, %v2178
  %v2193 = vpack.c.b16 %v2181, %v2180
  %v2194 = vpack.c.b16 %v2183, %v2182
  %v2195 = vpack.c.b16 %v2185, %v2184
  %v2196 = vpack.c.b16 %v2187, %v2186
  %v2197 = vpack.c.b16 %v2189, %v2188
  %2206 = vmatprep.subr.bf16.mxu0 0
  %2207 = vmatpush1.bf16.msra.mxu0 %v2197
  %2208 = vmatprep.subr.bf16.mxu0 0
  %2209 = vmatpush1.bf16.msra.mxu0 %v2196
  %2210 = vmatprep.subr.bf16.mxu0 0
  %2211 = vmatpush1.bf16.msra.mxu0 %v2195
  %2212 = vmatprep.subr.bf16.mxu0 0
  %2213 = vmatpush1.bf16.msra.mxu0 %v2194
  %2214 = vmatprep.subr.bf16.mxu0 0
  %2215 = vmatpush1.bf16.msra.mxu0 %v2193
  %2216 = vmatprep.subr.bf16.mxu0 0
  %2217 = vmatpush1.bf16.msra.mxu0 %v2192
  %2218 = vmatprep.subr.bf16.mxu0 0
  %2219 = vmatpush1.bf16.msra.mxu0 %v2191
  %2220 = vmatprep.subr.bf16.mxu0 0
  %2221 = vmatpush1.bf16.msra.mxu0 %v2190
  %2222 = vmatprep.subr.bf16.mxu0 0
  %2223 = vmatpush2.bf16.msra.mxu0 0
  %2224 = vmatprep.subr.bf16.mxu0 0
  %2225 = vmatpush2.bf16.msra.mxu0 0
  %2226 = vmatprep.subr.bf16.mxu0 0
  %2227 = vmatpush2.bf16.msra.mxu0 0
  %2228 = vmatprep.subr.bf16.mxu0 0
  %2229 = vmatpush2.bf16.msra.mxu0 0
  %2230 = vmatprep.subr.bf16.mxu0 0
  %2231 = vmatpush2.bf16.msra.mxu0 0
  %2232 = vmatprep.subr.bf16.mxu0 0
  %2233 = vmatpush2.bf16.msra.mxu0 0
  %2234 = vmatprep.subr.bf16.mxu0 0
  %2235 = vmatpush2.bf16.msra.mxu0 0
  %2236 = vmatprep.subr.bf16.mxu0 0
  %2237 = vmatpush2.bf16.msra.mxu0 0
  %2238 = vmatprep.mubr.bf16.mxu0 0
  %2239 = vmatmul.mubr.bf16.gmra.mxu0 %v2119
  %v2240 = vpop.f32.mrf.mxu0
  %v2241 = vadd.f32 %v2156, %v2240
  %v2242 = vpop.f32.mrf.mxu0
  %v2243 = vpop.f32.mrf.mxu0
  %v2244 = vadd.f32 %v2156, %v2243
  %v2245 = vpop.f32.mrf.mxu0
  %2246 = vmatprep.mubr.bf16.mxu0 0
  %2247 = vmatmul.mubr.bf16.gmra.mxu0 %v2120
  %v2248 = vpop.f32.mrf.mxu0
  %v2249 = vadd.f32 %v2156, %v2248
  %v2250 = vpop.f32.mrf.mxu0
  %v2251 = vpop.f32.mrf.mxu0
  %v2252 = vadd.f32 %v2156, %v2251
  %v2253 = vpop.f32.mrf.mxu0
  %2254 = vmatprep.mubr.bf16.mxu0 0
  %2255 = vmatmul.mubr.bf16.gmra.mxu0 %v2121
  %v2256 = vpop.f32.mrf.mxu0
  %v2257 = vadd.f32 %v2156, %v2256
  %v2258 = vpop.f32.mrf.mxu0
  %v2259 = vpop.f32.mrf.mxu0
  %v2260 = vadd.f32 %v2156, %v2259
  %v2261 = vpop.f32.mrf.mxu0
  %2262 = vmatprep.mubr.bf16.mxu0 0
  %2263 = vmatmul.mubr.bf16.gmra.mxu0 %v2122
  %v2264 = vpop.f32.mrf.mxu0
  %v2265 = vadd.f32 %v2156, %v2264
  %v2266 = vpop.f32.mrf.mxu0
  %v2267 = vpop.f32.mrf.mxu0
  %v2268 = vadd.f32 %v2156, %v2267
  %v2269 = vpop.f32.mrf.mxu0
  %2270 = vmatprep.mubr.bf16.mxu0 0
  %2271 = vmatmul.mubr.bf16.gmra.mxu0 %v2123
  %v2272 = vpop.f32.mrf.mxu0
  %v2273 = vadd.f32 %v2156, %v2272
  %v2274 = vpop.f32.mrf.mxu0
  %v2275 = vpop.f32.mrf.mxu0
  %v2276 = vadd.f32 %v2156, %v2275
  %v2277 = vpop.f32.mrf.mxu0
  %2278 = vmatprep.mubr.bf16.mxu0 0
  %2279 = vmatmul.mubr.bf16.gmra.mxu0 %v2124
  %v2280 = vpop.f32.mrf.mxu0
  %v2281 = vadd.f32 %v2156, %v2280
  %v2282 = vpop.f32.mrf.mxu0
  %v2283 = vpop.f32.mrf.mxu0
  %v2284 = vadd.f32 %v2156, %v2283
  %v2285 = vpop.f32.mrf.mxu0
  %2286 = vmatprep.mubr.bf16.mxu0 0
  %2287 = vmatmul.mubr.bf16.gmra.mxu0 %v2125
  %v2288 = vpop.f32.mrf.mxu0
  %v2289 = vadd.f32 %v2156, %v2288
  %v2290 = vpop.f32.mrf.mxu0
  %v2291 = vpop.f32.mrf.mxu0
  %v2292 = vadd.f32 %v2156, %v2291
  %v2293 = vpop.f32.mrf.mxu0
  %2294 = vmatprep.mubr.bf16.mxu0 0
  %2295 = vmatmul.mubr.bf16.gmra.mxu0 %v2126
  %v2296 = vpop.f32.mrf.mxu0
  %v2297 = vadd.f32 %v2156, %v2296
  %v2298 = vpop.f32.mrf.mxu0
  %v2299 = vpop.f32.mrf.mxu0
  %v2300 = vadd.f32 %v2156, %v2299
  %v2301 = vpop.f32.mrf.mxu0
  %2302 = vmatprep.mubr.bf16.mxu0 0
  %2303 = vmatmul.mubr.bf16.gmra.mxu0 %v2127
  %v2304 = vpop.f32.mrf.mxu0
  %v2305 = vadd.f32 %v2156, %v2304
  %v2306 = vpop.f32.mrf.mxu0
  %v2307 = vpop.f32.mrf.mxu0
  %v2308 = vadd.f32 %v2156, %v2307
  %v2309 = vpop.f32.mrf.mxu0
  %2310 = vmatprep.mubr.bf16.mxu0 0
  %2311 = vmatmul.mubr.bf16.gmra.mxu0 %v2128
  %v2312 = vpop.f32.mrf.mxu0
  %v2313 = vadd.f32 %v2156, %v2312
  %v2314 = vpop.f32.mrf.mxu0
  %v2315 = vpop.f32.mrf.mxu0
  %v2316 = vadd.f32 %v2156, %v2315
  %v2317 = vpop.f32.mrf.mxu0
  %2318 = vmatprep.mubr.bf16.mxu0 0
  %2319 = vmatmul.mubr.bf16.gmra.mxu0 %v2129
  %v2320 = vpop.f32.mrf.mxu0
  %v2321 = vadd.f32 %v2156, %v2320
  %v2322 = vpop.f32.mrf.mxu0
  %v2323 = vpop.f32.mrf.mxu0
  %v2324 = vadd.f32 %v2156, %v2323
  %v2325 = vpop.f32.mrf.mxu0
  %2326 = vmatprep.mubr.bf16.mxu0 0
  %2327 = vmatmul.mubr.bf16.gmra.mxu0 %v2130
  %v2328 = vpop.f32.mrf.mxu0
  %v2329 = vadd.f32 %v2156, %v2328
  %v2330 = vpop.f32.mrf.mxu0
  %v2331 = vpop.f32.mrf.mxu0
  %v2332 = vadd.f32 %v2156, %v2331
  %v2333 = vpop.f32.mrf.mxu0
  %2334 = vmatprep.mubr.bf16.mxu0 0
  %2335 = vmatmul.mubr.bf16.gmra.mxu0 %v2131
  %v2336 = vpop.f32.mrf.mxu0
  %v2337 = vadd.f32 %v2156, %v2336
  %v2338 = vpop.f32.mrf.mxu0
  %v2339 = vpop.f32.mrf.mxu0
  %v2340 = vadd.f32 %v2156, %v2339
  %v2341 = vpop.f32.mrf.mxu0
  %2342 = vmatprep.mubr.bf16.mxu0 0
  %2343 = vmatmul.mubr.bf16.gmra.mxu0 %v2132
  %v2344 = vpop.f32.mrf.mxu0
  %v2345 = vadd.f32 %v2156, %v2344
  %v2346 = vpop.f32.mrf.mxu0
  %v2347 = vpop.f32.mrf.mxu0
  %v2348 = vadd.f32 %v2156, %v2347
  %v2349 = vpop.f32.mrf.mxu0
  %2350 = vmatprep.mubr.bf16.mxu0 0
  %2351 = vmatmul.mubr.bf16.gmra.mxu0 %v2133
  %v2352 = vpop.f32.mrf.mxu0
  %v2353 = vadd.f32 %v2156, %v2352
  %v2354 = vpop.f32.mrf.mxu0
  %v2355 = vpop.f32.mrf.mxu0
  %v2356 = vadd.f32 %v2156, %v2355
  %v2357 = vpop.f32.mrf.mxu0
  %2358 = vmatprep.mubr.bf16.mxu0 0
  %2359 = vmatmul.mubr.bf16.gmra.mxu0 %v2134
  %v2360 = vpop.f32.mrf.mxu0
  %v2361 = vadd.f32 %v2156, %v2360
  %v2362 = vpop.f32.mrf.mxu0
  %v2363 = vpop.f32.mrf.mxu0
  %v2364 = vadd.f32 %v2156, %v2363
  %v2365 = vpop.f32.mrf.mxu0
  %2366 = vdwg.mxu0
  %2367 = vmax.xlane.f32.xlu0 %v2241
  %v2368 = vpop.xlane.xlu0 %2367
  %2369 = vmax.xlane.f32.xlu0 %v2244
  %v2370 = vpop.xlane.xlu0 %2369
  %2371 = vmax.xlane.f32.xlu0 %v2249
  %v2372 = vpop.xlane.xlu0 %2371
  %2373 = vmax.xlane.f32.xlu0 %v2252
  %v2374 = vpop.xlane.xlu0 %2373
  %2375 = vmax.xlane.f32.xlu0 %v2257
  %v2376 = vpop.xlane.xlu0 %2375
  %2377 = vmax.xlane.f32.xlu0 %v2260
  %v2378 = vpop.xlane.xlu0 %2377
  %2379 = vmax.xlane.f32.xlu0 %v2265
  %v2380 = vpop.xlane.xlu0 %2379
  %2381 = vmax.xlane.f32.xlu0 %v2268
  %v2382 = vpop.xlane.xlu0 %2381
  %2383 = vmax.xlane.f32.xlu0 %v2273
  %v2384 = vpop.xlane.xlu0 %2383
  %2385 = vmax.xlane.f32.xlu0 %v2276
  %v2386 = vpop.xlane.xlu0 %2385
  %2387 = vmax.xlane.f32.xlu0 %v2281
  %v2388 = vpop.xlane.xlu0 %2387
  %2389 = vmax.xlane.f32.xlu0 %v2284
  %v2390 = vpop.xlane.xlu0 %2389
  %2391 = vmax.xlane.f32.xlu0 %v2289
  %v2392 = vpop.xlane.xlu0 %2391
  %2393 = vmax.xlane.f32.xlu0 %v2292
  %v2394 = vpop.xlane.xlu0 %2393
  %2395 = vmax.xlane.f32.xlu0 %v2297
  %v2396 = vpop.xlane.xlu0 %2395
  %2397 = vmax.xlane.f32.xlu0 %v2300
  %v2398 = vpop.xlane.xlu0 %2397
  %2399 = vmax.xlane.f32.xlu0 %v2305
  %v2400 = vpop.xlane.xlu0 %2399
  %2401 = vmax.xlane.f32.xlu0 %v2308
  %v2402 = vpop.xlane.xlu0 %2401
  %2403 = vmax.xlane.f32.xlu0 %v2313
  %v2404 = vpop.xlane.xlu0 %2403
  %2405 = vmax.xlane.f32.xlu0 %v2316
  %v2406 = vpop.xlane.xlu0 %2405
  %2407 = vmax.xlane.f32.xlu0 %v2321
  %v2408 = vpop.xlane.xlu0 %2407
  %2409 = vmax.xlane.f32.xlu0 %v2324
  %v2410 = vpop.xlane.xlu0 %2409
  %2411 = vmax.xlane.f32.xlu0 %v2329
  %v2412 = vpop.xlane.xlu0 %2411
  %2413 = vmax.xlane.f32.xlu0 %v2332
  %v2414 = vpop.xlane.xlu0 %2413
  %2415 = vmax.xlane.f32.xlu0 %v2337
  %v2416 = vpop.xlane.xlu0 %2415
  %2417 = vmax.xlane.f32.xlu0 %v2340
  %v2418 = vpop.xlane.xlu0 %2417
  %2419 = vmax.xlane.f32.xlu0 %v2345
  %v2420 = vpop.xlane.xlu0 %2419
  %2421 = vmax.xlane.f32.xlu0 %v2348
  %v2422 = vpop.xlane.xlu0 %2421
  %2423 = vmax.xlane.f32.xlu0 %v2353
  %v2424 = vpop.xlane.xlu0 %2423
  %2425 = vmax.xlane.f32.xlu0 %v2356
  %v2426 = vpop.xlane.xlu0 %2425
  %2427 = vmax.xlane.f32.xlu0 %v2361
  %v2428 = vpop.xlane.xlu0 %2427
  %2429 = vmax.xlane.f32.xlu0 %v2364
  %v2430 = vpop.xlane.xlu0 %2429
  %v2431 = vsub.f32 %v2241, %v2368
  %v2432 = vsub.f32 %v2244, %v2370
  %v2433 = vsub.f32 %v2249, %v2372
  %v2434 = vsub.f32 %v2252, %v2374
  %v2435 = vsub.f32 %v2257, %v2376
  %v2436 = vsub.f32 %v2260, %v2378
  %v2437 = vsub.f32 %v2265, %v2380
  %v2438 = vsub.f32 %v2268, %v2382
  %v2439 = vsub.f32 %v2273, %v2384
  %v2440 = vsub.f32 %v2276, %v2386
  %v2441 = vsub.f32 %v2281, %v2388
  %v2442 = vsub.f32 %v2284, %v2390
  %v2443 = vsub.f32 %v2289, %v2392
  %v2444 = vsub.f32 %v2292, %v2394
  %v2445 = vsub.f32 %v2297, %v2396
  %v2446 = vsub.f32 %v2300, %v2398
  %v2447 = vsub.f32 %v2305, %v2400
  %v2448 = vsub.f32 %v2308, %v2402
  %v2449 = vsub.f32 %v2313, %v2404
  %v2450 = vsub.f32 %v2316, %v2406
  %v2451 = vsub.f32 %v2321, %v2408
  %v2452 = vsub.f32 %v2324, %v2410
  %v2453 = vsub.f32 %v2329, %v2412
  %v2454 = vsub.f32 %v2332, %v2414
  %v2455 = vsub.f32 %v2337, %v2416
  %v2456 = vsub.f32 %v2340, %v2418
  %v2457 = vsub.f32 %v2345, %v2420
  %v2458 = vsub.f32 %v2348, %v2422
  %v2459 = vsub.f32 %v2353, %v2424
  %v2460 = vsub.f32 %v2356, %v2426
  %v2461 = vsub.f32 %v2361, %v2428
  %v2462 = vsub.f32 %v2364, %v2430
  %v2463 = vmul.f32 %v2431, 1.442695
  %v2464 = vpow.pop %v2463
  %v2465 = vmul.f32 %v2432, 1.442695
  %v2466 = vpow.pop %v2465
  %v2467 = vmul.f32 %v2433, 1.442695
  %v2468 = vpow.pop %v2467
  %v2469 = vmul.f32 %v2434, 1.442695
  %v2470 = vpow.pop %v2469
  %v2471 = vmul.f32 %v2435, 1.442695
  %v2472 = vpow.pop %v2471
  %v2473 = vmul.f32 %v2436, 1.442695
  %v2474 = vpow.pop %v2473
  %v2475 = vmul.f32 %v2437, 1.442695
  %v2476 = vpow.pop %v2475
  %v2477 = vmul.f32 %v2438, 1.442695
  %v2478 = vpow.pop %v2477
  %v2479 = vmul.f32 %v2439, 1.442695
  %v2480 = vpow.pop %v2479
  %v2481 = vmul.f32 %v2440, 1.442695
  %v2482 = vpow.pop %v2481
  %v2483 = vmul.f32 %v2441, 1.442695
  %v2484 = vpow.pop %v2483
  %v2485 = vmul.f32 %v2442, 1.442695
  %v2486 = vpow.pop %v2485
  %v2487 = vmul.f32 %v2443, 1.442695
  %v2488 = vpow.pop %v2487
  %v2489 = vmul.f32 %v2444, 1.442695
  %v2490 = vpow.pop %v2489
  %v2491 = vmul.f32 %v2445, 1.442695
  %v2492 = vpow.pop %v2491
  %v2493 = vmul.f32 %v2446, 1.442695
  %v2494 = vpow.pop %v2493
  %v2495 = vmul.f32 %v2447, 1.442695
  %v2496 = vpow.pop %v2495
  %v2497 = vmul.f32 %v2448, 1.442695
  %v2498 = vpow.pop %v2497
  %v2499 = vmul.f32 %v2449, 1.442695
  %v2500 = vpow.pop %v2499
  %v2501 = vmul.f32 %v2450, 1.442695
  %v2502 = vpow.pop %v2501
  %v2503 = vmul.f32 %v2451, 1.442695
  %v2504 = vpow.pop %v2503
  %v2505 = vmul.f32 %v2452, 1.442695
  %v2506 = vpow.pop %v2505
  %v2507 = vmul.f32 %v2453, 1.442695
  %v2508 = vpow.pop %v2507
  %v2509 = vmul.f32 %v2454, 1.442695
  %v2510 = vpow.pop %v2509
  %v2511 = vmul.f32 %v2455, 1.442695
  %v2512 = vpow.pop %v2511
  %v2513 = vmul.f32 %v2456, 1.442695
  %v2514 = vpow.pop %v2513
  %v2515 = vmul.f32 %v2457, 1.442695
  %v2516 = vpow.pop %v2515
  %v2517 = vmul.f32 %v2458, 1.442695
  %v2518 = vpow.pop %v2517
  %v2519 = vmul.f32 %v2459, 1.442695
  %v2520 = vpow.pop %v2519
  %v2521 = vmul.f32 %v2460, 1.442695
  %v2522 = vpow.pop %v2521
  %v2523 = vmul.f32 %v2461, 1.442695
  %v2524 = vpow.pop %v2523
  %v2525 = vmul.f32 %v2462, 1.442695
  %v2526 = vpow.pop %v2525
  %2527 = vadd.xlane.f32.xlu0 %v2464
  %v2528 = vpop.xlane.xlu0 %2527
  %2529 = vadd.xlane.f32.xlu0 %v2466
  %v2530 = vpop.xlane.xlu0 %2529
  %2531 = vadd.xlane.f32.xlu0 %v2468
  %v2532 = vpop.xlane.xlu0 %2531
  %2533 = vadd.xlane.f32.xlu0 %v2470
  %v2534 = vpop.xlane.xlu0 %2533
  %2535 = vadd.xlane.f32.xlu0 %v2472
  %v2536 = vpop.xlane.xlu0 %2535
  %2537 = vadd.xlane.f32.xlu0 %v2474
  %v2538 = vpop.xlane.xlu0 %2537
  %2539 = vadd.xlane.f32.xlu0 %v2476
  %v2540 = vpop.xlane.xlu0 %2539
  %2541 = vadd.xlane.f32.xlu0 %v2478
  %v2542 = vpop.xlane.xlu0 %2541
  %2543 = vadd.xlane.f32.xlu0 %v2480
  %v2544 = vpop.xlane.xlu0 %2543
  %2545 = vadd.xlane.f32.xlu0 %v2482
  %v2546 = vpop.xlane.xlu0 %2545
  %2547 = vadd.xlane.f32.xlu0 %v2484
  %v2548 = vpop.xlane.xlu0 %2547
  %2549 = vadd.xlane.f32.xlu0 %v2486
  %v2550 = vpop.xlane.xlu0 %2549
  %2551 = vadd.xlane.f32.xlu0 %v2488
  %v2552 = vpop.xlane.xlu0 %2551
  %2553 = vadd.xlane.f32.xlu0 %v2490
  %v2554 = vpop.xlane.xlu0 %2553
  %2555 = vadd.xlane.f32.xlu0 %v2492
  %v2556 = vpop.xlane.xlu0 %2555
  %2557 = vadd.xlane.f32.xlu0 %v2494
  %v2558 = vpop.xlane.xlu0 %2557
  %2559 = vadd.xlane.f32.xlu0 %v2496
  %v2560 = vpop.xlane.xlu0 %2559
  %2561 = vadd.xlane.f32.xlu0 %v2498
  %v2562 = vpop.xlane.xlu0 %2561
  %2563 = vadd.xlane.f32.xlu0 %v2500
  %v2564 = vpop.xlane.xlu0 %2563
  %2565 = vadd.xlane.f32.xlu0 %v2502
  %v2566 = vpop.xlane.xlu0 %2565
  %2567 = vadd.xlane.f32.xlu0 %v2504
  %v2568 = vpop.xlane.xlu0 %2567
  %2569 = vadd.xlane.f32.xlu0 %v2506
  %v2570 = vpop.xlane.xlu0 %2569
  %2571 = vadd.xlane.f32.xlu0 %v2508
  %v2572 = vpop.xlane.xlu0 %2571
  %2573 = vadd.xlane.f32.xlu0 %v2510
  %v2574 = vpop.xlane.xlu0 %2573
  %2575 = vadd.xlane.f32.xlu0 %v2512
  %v2576 = vpop.xlane.xlu0 %2575
  %2577 = vadd.xlane.f32.xlu0 %v2514
  %v2578 = vpop.xlane.xlu0 %2577
  %2579 = vadd.xlane.f32.xlu0 %v2516
  %v2580 = vpop.xlane.xlu0 %2579
  %2581 = vadd.xlane.f32.xlu0 %v2518
  %v2582 = vpop.xlane.xlu0 %2581
  %2583 = vadd.xlane.f32.xlu0 %v2520
  %v2584 = vpop.xlane.xlu0 %2583
  %2585 = vadd.xlane.f32.xlu0 %v2522
  %v2586 = vpop.xlane.xlu0 %2585
  %2587 = vadd.xlane.f32.xlu0 %v2524
  %v2588 = vpop.xlane.xlu0 %2587
  %2589 = vadd.xlane.f32.xlu0 %v2526
  %v2590 = vpop.xlane.xlu0 %2589
  %v2591 = vrcp.pop %v2528
  %v2592 = vrcp.pop %v2530
  %v2593 = vrcp.pop %v2532
  %v2594 = vrcp.pop %v2534
  %v2595 = vrcp.pop %v2536
  %v2596 = vrcp.pop %v2538
  %v2597 = vrcp.pop %v2540
  %v2598 = vrcp.pop %v2542
  %v2599 = vrcp.pop %v2544
  %v2600 = vrcp.pop %v2546
  %v2601 = vrcp.pop %v2548
  %v2602 = vrcp.pop %v2550
  %v2603 = vrcp.pop %v2552
  %v2604 = vrcp.pop %v2554
  %v2605 = vrcp.pop %v2556
  %v2606 = vrcp.pop %v2558
  %v2607 = vrcp.pop %v2560
  %v2608 = vrcp.pop %v2562
  %v2609 = vrcp.pop %v2564
  %v2610 = vrcp.pop %v2566
  %v2611 = vrcp.pop %v2568
  %v2612 = vrcp.pop %v2570
  %v2613 = vrcp.pop %v2572
  %v2614 = vrcp.pop %v2574
  %v2615 = vrcp.pop %v2576
  %v2616 = vrcp.pop %v2578
  %v2617 = vrcp.pop %v2580
  %v2618 = vrcp.pop %v2582
  %v2619 = vrcp.pop %v2584
  %v2620 = vrcp.pop %v2586
  %v2621 = vrcp.pop %v2588
  %v2622 = vrcp.pop %v2590
  %v2623 = vmul.f32 %v2464, %v2591
  %v2624 = vmul.f32 %v2466, %v2592
  %v2625 = vmul.f32 %v2468, %v2593
  %v2626 = vmul.f32 %v2470, %v2594
  %v2627 = vmul.f32 %v2472, %v2595
  %v2628 = vmul.f32 %v2474, %v2596
  %v2629 = vmul.f32 %v2476, %v2597
  %v2630 = vmul.f32 %v2478, %v2598
  %v2631 = vmul.f32 %v2480, %v2599
  %v2632 = vmul.f32 %v2482, %v2600
  %v2633 = vmul.f32 %v2484, %v2601
  %v2634 = vmul.f32 %v2486, %v2602
  %v2635 = vmul.f32 %v2488, %v2603
  %v2636 = vmul.f32 %v2490, %v2604
  %v2637 = vmul.f32 %v2492, %v2605
  %v2638 = vmul.f32 %v2494, %v2606
  %v2639 = vmul.f32 %v2496, %v2607
  %v2640 = vmul.f32 %v2498, %v2608
  %v2641 = vmul.f32 %v2500, %v2609
  %v2642 = vmul.f32 %v2502, %v2610
  %v2643 = vmul.f32 %v2504, %v2611
  %v2644 = vmul.f32 %v2506, %v2612
  %v2645 = vmul.f32 %v2508, %v2613
  %v2646 = vmul.f32 %v2510, %v2614
  %v2647 = vmul.f32 %v2512, %v2615
  %v2648 = vmul.f32 %v2514, %v2616
  %v2649 = vmul.f32 %v2516, %v2617
  %v2650 = vmul.f32 %v2518, %v2618
  %v2651 = vmul.f32 %v2520, %v2619
  %v2652 = vmul.f32 %v2522, %v2620
  %v2653 = vmul.f32 %v2524, %v2621
  %v2654 = vmul.f32 %v2526, %v2622
  %2655 = vst [vmem:[%s7] sm:$0xff] %v2623
  %2656 = vst [vmem:[%s7 + $0x8] sm:$0xff] %v2624
  %2657 = vst [vmem:[%s7 + $0x10] sm:$0xff] %v2625
  %2658 = vst [vmem:[%s7 + $0x18] sm:$0xff] %v2626
  %2659 = vst [vmem:[%s7 + $0x20] sm:$0xff] %v2627
  %2660 = vst [vmem:[%s7 + $0x28] sm:$0xff] %v2628
  %2661 = vst [vmem:[%s7 + $0x30] sm:$0xff] %v2629
  %2662 = vst [vmem:[%s7 + $0x38] sm:$0xff] %v2630
  %2663 = vst [vmem:[%s7 + $0x40] sm:$0xff] %v2631
  %2664 = vst [vmem:[%s7 + $0x48] sm:$0xff] %v2632
  %2665 = vst [vmem:[%s7 + $0x50] sm:$0xff] %v2633
  %2666 = vst [vmem:[%s7 + $0x58] sm:$0xff] %v2634
  %2667 = vst [vmem:[%s7 + $0x60] sm:$0xff] %v2635
  %2668 = vst [vmem:[%s7 + $0x68] sm:$0xff] %v2636
  %2669 = vst [vmem:[%s7 + $0x70] sm:$0xff] %v2637
  %2670 = vst [vmem:[%s7 + $0x78] sm:$0xff] %v2638
  %2671 = vst [vmem:[%s7 + $0x80] sm:$0xff] %v2639
  %2672 = vst [vmem:[%s7 + $0x88] sm:$0xff] %v2640
  %2673 = vst [vmem:[%s7 + $0x90] sm:$0xff] %v2641
  %2674 = vst [vmem:[%s7 + $0x98] sm:$0xff] %v2642
  %2675 = vst [vmem:[%s7 + $0xa0] sm:$0xff] %v2643
  %2676 = vst [vmem:[%s7 + $0xa8] sm:$0xff] %v2644
  %2677 = vst [vmem:[%s7 + $0xb0] sm:$0xff] %v2645
  %2678 = vst [vmem:[%s7 + $0xb8] sm:$0xff] %v2646
  %2679 = vst [vmem:[%s7 + $0xc0] sm:$0xff] %v2647
  %2680 = vst [vmem:[%s7 + $0xc8] sm:$0xff] %v2648
  %2681 = vst [vmem:[%s7 + $0xd0] sm:$0xff] %v2649
  %2682 = vst [vmem:[%s7 + $0xd8] sm:$0xff] %v2650
  %2683 = vst [vmem:[%s7 + $0xe0] sm:$0xff] %v2651
  %2684 = vst [vmem:[%s7 + $0xe8] sm:$0xff] %v2652
  %2685 = vst [vmem:[%s7 + $0xf0] sm:$0xff] %v2653
  %2686 = vst [vmem:[%s7 + $0xf8] sm:$0xff] %v2654
  // Predicated region
  $region30: #{mlp_forward.1} parent=0 // pred_check
    _
  $region31: #{mlp_forward.1} parent=0 // pred_check_branch
    %2688 = sbr.rel (0) target = $region33
  $region32: #{mlp_forward.1} parent=0 // pred_region
    _
  $region33: #{mlp_forward.1} parent=0 // pred_fallthru
    _
  // Predicated region
  $region34: #{mlp_forward.1} parent=0 // pred_check
    _
  $region35: #{mlp_forward.1} parent=0 // pred_check_branch
    %2690 = sbr.rel (0) target = $region37
  $region36: #{mlp_forward.1} parent=0 // pred_region
    _
  $region37: #{mlp_forward.1} parent=0 // pred_fallthru
    _

</llo_original>
